<compile_context>
chip_gen: v7x
topology: tpu7x:2x2x1
jax: 0.10.0
libtpu: 0.0.40
codegen_flags: <defaults>
</compile_context>

<pallas_src>
import jax
import jax.numpy as jnp
from jax import lax
from jax.experimental import pallas as pl
from jax.experimental.pallas import tpu as pltpu


def _self_attn_kernel(x_ref, wq_ref, wkv_ref, gamma_ref, out_ref, attn_ref,
                      kv_ref):
    # x_ref   : (1, C+1, N)  feature map of current batch element, ones row appended
    # wq_ref  : (C, C+1)     query 1x1-conv weight with bias column folded in
    # wkv_ref : (2C, C+1)    [Wk; Wv] fused, bias columns folded in
    # gamma   : (1, 1)       scalar in SMEM
    # out_ref : (1, C, TQ)   lane-dense output tile
    # attn_ref: (1, TQ, N)   attention rows for this query tile
    # kv_ref  : (2C, N)      VMEM scratch, persists across qi iterations
    C = wq_ref.shape[0]
    TQ = out_ref.shape[2]
    qi = pl.program_id(1)

    # K/V projection over all N tokens, computed ONCE per batch element
    # (qi axis is "arbitrary", so qi == 0 runs first for each b).
    @pl.when(qi == 0)
    def _():
        kv_ref[...] = jnp.dot(wkv_ref[...], x_ref[0],
                              preferred_element_type=jnp.float32)   # (2C, N)

    q_start = pl.multiple_of(qi * TQ, TQ)
    x_tile_aug = x_ref[0, :, pl.ds(q_start, TQ)]                    # (C+1, TQ)
    x_tile = x_tile_aug[:C, :]                                      # (C, TQ) residual

    # Q projection only for this query tile (bias folded into the weight).
    q = jnp.dot(wq_ref[...], x_tile_aug,
                preferred_element_type=jnp.float32)                 # (C, TQ)

    kv = kv_ref[...]                                                # (2C, N)
    k = kv[:C, :]                                                   # (C, N)
    v = kv[C:, :]                                                   # (C, N)

    # energy[i, j] = <q_i, k_j>: contract the channel axis directly.
    energy = lax.dot_general(q, k, (((0,), (0,)), ((), ())),
                             preferred_element_type=jnp.float32)    # (TQ, N)

    # Numerically stable softmax along keys; hoisted reciprocal + multiply.
    m = jnp.max(energy, axis=-1, keepdims=True)
    p = jnp.exp(energy - m)
    denom = jnp.sum(p, axis=-1, keepdims=True)
    attn = p * pl.reciprocal(denom, approx=False)                   # (TQ, N)
    attn_ref[0] = attn.astype(attn_ref.dtype)

    # out[c, i] = sum_j v[c, j] * attn[i, j]  (== bmm(V, attn^T) in torch).
    out_attn = lax.dot_general(v, attn, (((1,), (1,)), ((), ())),
                               preferred_element_type=jnp.float32)  # (C, TQ)

    out_ref[0] = gamma_ref[0, 0] * out_attn + x_tile


def _choose_tile_and_vmem(N, C, attn_itemsize):
    """Pick the query-tile size and vmem limit from the chip's VMEM capacity."""
    try:
        vmem_cap = int(pltpu.get_tpu_info().vmem_capacity_bytes)
    except Exception:  # pragma: no cover - conservative fallback (v7x per-TC)
        vmem_cap = 64 * 1024 * 1024
    budget = int(vmem_cap * 0.70)   # headroom for compiler scratch / spills

    lanes_n = max(N, 128)

    def vmem_need(tq):
        x_blk = 2 * 8 * lanes_n * 4                    # (C+1) pads to 8 sublanes, dbl-buffered
        out_blk = 2 * 8 * max(tq, 128) * 4             # (1,C,tq) out block, dbl-buffered
        attn_blk = 2 * tq * lanes_n * attn_itemsize    # (1,tq,N) attn block, dbl-buffered
        kv_scr = 2 * max(C, 4) * lanes_n * 4           # (2C,N) scratch (single)
        slabs = 3 * tq * lanes_n * 4                   # energy / p / attn f32 intermediates
        return x_blk + out_blk + attn_blk + kv_scr + slabs

    # Fewest grid steps that fit: largest lane-dense tile first.
    candidates = []
    if N <= 512:
        candidates.append(N)
    for t in (512, 256, 128):
        if t < N and N % t == 0:
            candidates.append(t)
    if not candidates:
        candidates = [N]
    tq = candidates[-1]
    for t in candidates:
        if vmem_need(t) <= budget:
            tq = t
            break

    vmem_limit = min(int(vmem_cap * 0.85), 110 * 1024 * 1024)
    vmem_limit = max(vmem_limit, min(vmem_cap, vmem_need(tq) + (8 << 20)))
    vmem_limit = min(vmem_limit, vmem_cap)
    return tq, vmem_limit


def self_attn_forward(x_nchw, wq, bq, wk, bk, wv, bv, gamma, *,
                      attn_dtype=jnp.float32):
    """x_nchw: (B, C, W, H) float32. Returns (out_nchw, attention, gamma)."""
    B, C, W, H = x_nchw.shape
    N = W * H
    attn_itemsize = jnp.dtype(attn_dtype).itemsize
    tq, vmem_limit = _choose_tile_and_vmem(N, C, attn_itemsize)
    n_tiles = N // tq

    # NCHW -> (B, C, N) is a free reshape; append a ones row so the conv biases
    # fold into the weight matmuls (no separate bias tiles / broadcasts).
    x_cn = x_nchw.reshape(B, C, N).astype(jnp.float32)
    x_aug = jnp.concatenate(
        [x_cn, jnp.ones((B, 1, N), dtype=jnp.float32)], axis=1)      # (B, C+1, N)

    wq_aug = jnp.concatenate(
        [wq.astype(jnp.float32), bq.reshape(C, 1).astype(jnp.float32)],
        axis=1)                                                       # (C, C+1)
    w_kv = jnp.concatenate([wk, wv], axis=0).astype(jnp.float32)      # (2C, C)
    b_kv = jnp.concatenate([bk, bv], axis=0).reshape(2 * C, 1).astype(jnp.float32)
    wkv_aug = jnp.concatenate([w_kv, b_kv], axis=1)                   # (2C, C+1)
    gamma2 = gamma.reshape(1, 1).astype(jnp.float32)

    flops = int(B * (2 * (2 * C) * (C + 1) * N      # K/V projection (once per b)
                     + 2 * C * (C + 1) * N          # Q projection (over all tiles)
                     + 2 * C * N * N                # Q.K^T
                     + 2 * C * N * N))              # attn.V
    transcendentals = int(B * N * N)                # exp in softmax
    bytes_accessed = int(4 * (B * (C + 1) * N       # x read (resident across qi)
                              + B * C * N           # out write
                              + 2 * (C + 1) * C + 2 * (C + 1) * 2 * C + 1)
                         + B * N * N * attn_itemsize)

    out_cn, attn = pl.pallas_call(
        _self_attn_kernel,
        out_shape=(
            jax.ShapeDtypeStruct((B, C, N), jnp.float32),
            jax.ShapeDtypeStruct((B, N, N), attn_dtype),
        ),
        grid_spec=pltpu.PrefetchScalarGridSpec(
            num_scalar_prefetch=0,
            grid=(B, n_tiles),
            in_specs=[
                pl.BlockSpec((1, C + 1, N), lambda b, qi: (b, 0, 0)),    # x (aug)
                pl.BlockSpec((C, C + 1), lambda b, qi: (0, 0)),          # Wq|bq
                pl.BlockSpec((2 * C, C + 1), lambda b, qi: (0, 0)),      # [Wk;Wv]|b
                pl.BlockSpec(memory_space=pltpu.MemorySpace.SMEM),       # gamma
            ],
            out_specs=[
                pl.BlockSpec((1, C, tq), lambda b, qi: (b, 0, qi)),      # out  (B,C,N)
                pl.BlockSpec((1, tq, N), lambda b, qi: (b, qi, 0)),      # attn (B,N,N)
            ],
            scratch_shapes=[pltpu.VMEM((2 * C, N), jnp.float32)],        # K/V cache
        ),
        compiler_params=pltpu.CompilerParams(
            # b stays parallel (megacore shards over batch); qi must be
            # sequential so the KV scratch computed at qi == 0 is reused.
            dimension_semantics=("parallel", "arbitrary"),
            vmem_limit_bytes=vmem_limit,
        ),
        cost_estimate=pl.CostEstimate(
            flops=flops,
            transcendentals=transcendentals,
            bytes_accessed=bytes_accessed,
        ),
    )(x_aug, wq_aug, wkv_aug, gamma2)

    out_nchw = out_cn.reshape(B, C, W, H)   # free reshape back to NCHW
    return out_nchw, attn, gamma


def self_attn_reference(x_nchw, wq, bq, wk, bk, wv, bv, gamma):
    """Pure-JAX reference mirroring the PyTorch forward."""
    B, C, W, H = x_nchw.shape
    N = W * H
    x_flat = x_nchw.reshape(B, C, N)                     # (B, C, N)
    q = jnp.einsum('oc,bcn->bon', wq, x_flat) + bq[None, :, None]
    k = jnp.einsum('oc,bcn->bon', wk, x_flat) + bk[None, :, None]
    v = jnp.einsum('oc,bcn->bon', wv, x_flat) + bv[None, :, None]
    proj_query = jnp.transpose(q, (0, 2, 1))             # (B, N, C)
    energy = jnp.einsum('bnc,bcm->bnm', proj_query, k)   # (B, N, N)
    attn = jax.nn.softmax(energy, axis=-1)
    out = jnp.einsum('bcn,bmn->bcm', v, attn)            # (B, C, N)
    out = out.reshape(B, C, W, H)
    out = gamma.reshape(()) * out + x_nchw
    return out, attn


if __name__ == "__main__":
    key = jax.random.PRNGKey(0)
    B, C, W, H = 2, 4, 16, 16

    k_x, k_wq, k_bq, k_wk, k_bk, k_wv, k_bv = jax.random.split(key, 7)
    x = jax.random.normal(k_x, (B, C, W, H), dtype=jnp.float32)

    # 1x1 conv weights: (out_ch, in_ch) (kernel_size=1 dims squeezed).
    wq = jax.random.normal(k_wq, (C, C), dtype=jnp.float32) * 0.1
    bq = jax.random.normal(k_bq, (C,), dtype=jnp.float32) * 0.1
    wk = jax.random.normal(k_wk, (C, C), dtype=jnp.float32) * 0.1
    bk = jax.random.normal(k_bk, (C,), dtype=jnp.float32) * 0.1
    wv = jax.random.normal(k_wv, (C, C), dtype=jnp.float32) * 0.1
    bv = jax.random.normal(k_bv, (C,), dtype=jnp.float32) * 0.1

    # gamma = 0 matches the module's __init__; also test a nonzero gamma so the
    # attention/residual path of `out` is actually exercised.
    # TODO(synk): the torch forward's print(gamma/attention/x/out) side effects
    # are intentionally not replicated.
    for g in (jnp.zeros((1,), dtype=jnp.float32),
              jnp.full((1,), 0.7, dtype=jnp.float32)):
        out, attn, gamma_out = self_attn_forward(x, wq, bq, wk, bk, wv, bv, g)
        out = jax.block_until_ready(out)
        attn = jax.block_until_ready(attn)

        out_ref, attn_ref = self_attn_reference(x, wq, bq, wk, bk, wv, bv, g)
        assert out.shape == (B, C, W, H)
        assert attn.shape == (B, W * H, W * H)
        assert jnp.allclose(attn, attn_ref, atol=1e-5, rtol=1e-5)
        assert jnp.allclose(out, out_ref, atol=1e-4, rtol=1e-4)

    print("KERNEL_OK")
</pallas_src>

<mosaic_0001>
module attributes {stable_mosaic.version = 11 : i64} {
  func.func @_self_attn_kernel(%arg0: i32, %arg1: i32, %arg2: memref<1x5x256xf32, #tpu.memory_space<vmem>>, %arg3: memref<4x5xf32, #tpu.memory_space<vmem>>, %arg4: memref<8x5xf32, #tpu.memory_space<vmem>>, %arg5: memref<1x1xf32, #tpu.memory_space<smem>>, %arg6: memref<1x4x256xf32, #tpu.memory_space<vmem>>, %arg7: memref<1x256x256xf32, #tpu.memory_space<vmem>>, %arg8: memref<8x256xf32, #tpu.memory_space<vmem>>) attributes {dimension_semantics = [#tpu.dimension_semantics<parallel>, #tpu.dimension_semantics<arbitrary>], iteration_bounds = array<i64: 2, 1>, scalar_prefetch = 0 : i64, scratch_operands = 1 : i64, tpu.core_type = #tpu.core_type<tc>, window_params = [{transform_indices = @transform_0, window_bounds = array<i64: 1, 5, 256>}, {pipeline_mode = #tpu.pipeline_mode<synchronous>, transform_indices = @transform_1, window_bounds = array<i64: 4, 5>}, {pipeline_mode = #tpu.pipeline_mode<synchronous>, transform_indices = @transform_2, window_bounds = array<i64: 8, 5>}, {transform_indices = @transform_3, window_bounds = array<i64: 1, 1>}, {transform_indices = @transform_4, window_bounds = array<i64: 1, 4, 256>}, {transform_indices = @transform_5, window_bounds = array<i64: 1, 256, 256>}]} {
    %c0_i32 = arith.constant 0 : i32
    %0 = arith.cmpi eq, %arg1, %c0_i32 : i32
    %1 = arith.extui %0 : i1 to i32
    %c0_i32_0 = arith.constant 0 : i32
    %2 = arith.cmpi ne, %1, %c0_i32_0 : i32
    scf.if %2 {
      %c0_18 = arith.constant 0 : index
      %c0_19 = arith.constant 0 : index
      %36 = vector.load %arg4[%c0_18, %c0_19] : memref<8x5xf32, #tpu.memory_space<vmem>>, vector<8x5xf32>
      %c0_20 = arith.constant 0 : index
      %c0_21 = arith.constant 0 : index
      %c0_22 = arith.constant 0 : index
      %37 = vector.load %arg2[%c0_20, %c0_21, %c0_22] : memref<1x5x256xf32, #tpu.memory_space<vmem>>, vector<1x5x256xf32>
      %38 = vector.shape_cast %37 : vector<1x5x256xf32> to vector<5x256xf32>
      %cst_23 = arith.constant dense<0.000000e+00> : vector<8x256xf32>
      %39 = tpu.matmul %36, %38, %cst_23 {dimension_numbers = #tpu.dot_dimension_numbers<[1], [0], [0], [1], [0, 0, 1, 1], [], []>} : vector<8x5xf32>, vector<5x256xf32>, vector<8x256xf32> -> vector<8x256xf32>
      %c0_24 = arith.constant 0 : index
      %c0_25 = arith.constant 0 : index
      %40 = vector.load %arg8[%c0_24, %c0_25] : memref<8x256xf32, #tpu.memory_space<vmem>>, vector<8x256xf32>
      tpu.vector_store %arg8[%c0_24, %c0_25], %39 {strides = array<i32>} : memref<8x256xf32, #tpu.memory_space<vmem>>, vector<8x256xf32>,
    } else {
    }
    %c256_i32 = arith.constant 256 : i32
    %3 = arith.muli %arg1, %c256_i32 : i32
    %4 = tpu.assume_multiple %3, 256 : i32
    %c0 = arith.constant 0 : index
    %c0_1 = arith.constant 0 : index
    %5 = arith.index_cast %4 : i32 to index
    %6 = vector.load %arg2[%c0, %c0_1, %5] : memref<1x5x256xf32, #tpu.memory_space<vmem>>, vector<1x5x256xf32>
    %7 = vector.shape_cast %6 : vector<1x5x256xf32> to vector<5x256xf32>
    %8 = vector.extract_strided_slice %7 {offsets = [0, 0], sizes = [4, 256], strides = [1, 1]} : vector<5x256xf32> to vector<4x256xf32>
    %c0_2 = arith.constant 0 : index
    %c0_3 = arith.constant 0 : index
    %9 = vector.load %arg3[%c0_2, %c0_3] : memref<4x5xf32, #tpu.memory_space<vmem>>, vector<4x5xf32>
    %cst = arith.constant dense<0.000000e+00> : vector<4x256xf32>
    %10 = tpu.matmul %9, %7, %cst {dimension_numbers = #tpu.dot_dimension_numbers<[1], [0], [0], [1], [0, 0, 1, 1], [], []>} : vector<4x5xf32>, vector<5x256xf32>, vector<4x256xf32> -> vector<4x256xf32>
    %c0_4 = arith.constant 0 : index
    %c0_5 = arith.constant 0 : index
    %11 = vector.load %arg8[%c0_4, %c0_5] : memref<8x256xf32, #tpu.memory_space<vmem>>, vector<8x256xf32>
    %12 = vector.extract_strided_slice %11 {offsets = [0, 0], sizes = [4, 256], strides = [1, 1]} : vector<8x256xf32> to vector<4x256xf32>
    %13 = vector.extract_strided_slice %11 {offsets = [4, 0], sizes = [4, 256], strides = [1, 1]} : vector<8x256xf32> to vector<4x256xf32>
    %cst_6 = arith.constant dense<0.000000e+00> : vector<256x256xf32>
    %14 = tpu.matmul %10, %12, %cst_6 {dimension_numbers = #tpu.dot_dimension_numbers<[0], [0], [1], [1], [0, 1, 1, 1], [], []>} : vector<4x256xf32>, vector<4x256xf32>, vector<256x256xf32> -> vector<256x256xf32>
    %cst_7 = arith.constant dense<0xFF800000> : vector<256xf32>
    %15 = vector.multi_reduction <maximumf>, %14, %cst_7 [1] : vector<256x256xf32> to vector<256xf32>
    %16 = vector.shape_cast %15 : vector<256xf32> to vector<256x1xf32>
    %17 = vector.broadcast %16 : vector<256x1xf32> to vector<256x256xf32>
    %18 = arith.subf %14, %17 : vector<256x256xf32>
    %19 = math.exp %18 : vector<256x256xf32>
    %cst_8 = arith.constant dense<0.000000e+00> : vector<256xf32>
    %20 = vector.multi_reduction <add>, %19, %cst_8 [1] : vector<256x256xf32> to vector<256xf32>
    %21 = vector.shape_cast %20 : vector<256xf32> to vector<256x1xf32>
    %22 = tpu.reciprocal %21 : vector<256x1xf32> -> vector<256x1xf32>
    %23 = vector.broadcast %22 : vector<256x1xf32> to vector<256x256xf32>
    %24 = arith.mulf %19, %23 : vector<256x256xf32>
    %c0_9 = arith.constant 0 : index
    %c0_10 = arith.constant 0 : index
    %c0_11 = arith.constant 0 : index
    %25 = vector.load %arg7[%c0_9, %c0_10, %c0_11] : memref<1x256x256xf32, #tpu.memory_space<vmem>>, vector<1x256x256xf32>
    %26 = vector.shape_cast %25 : vector<1x256x256xf32> to vector<256x256xf32>
    %27 = vector.shape_cast %24 : vector<256x256xf32> to vector<1x256x256xf32>
    tpu.vector_store %arg7[%c0_9, %c0_10, %c0_11], %27 {strides = array<i32>} : memref<1x256x256xf32, #tpu.memory_space<vmem>>, vector<1x256x256xf32>,
    %cst_12 = arith.constant dense<0.000000e+00> : vector<4x256xf32>
    %28 = tpu.matmul %13, %24, %cst_12 {dimension_numbers = #tpu.dot_dimension_numbers<[1], [1], [0], [0], [0, 0, 1, 0], [], []>} : vector<4x256xf32>, vector<256x256xf32>, vector<4x256xf32> -> vector<4x256xf32>
    %c0_13 = arith.constant 0 : index
    %c0_14 = arith.constant 0 : index
    %29 = memref.load %arg5[%c0_13, %c0_14] : memref<1x1xf32, #tpu.memory_space<smem>>
    %30 = vector.broadcast %29 : f32 to vector<4x256xf32>
    %31 = arith.mulf %30, %28 : vector<4x256xf32>
    %32 = arith.addf %31, %8 : vector<4x256xf32>
    %c0_15 = arith.constant 0 : index
    %c0_16 = arith.constant 0 : index
    %c0_17 = arith.constant 0 : index
    %33 = vector.load %arg6[%c0_15, %c0_16, %c0_17] : memref<1x4x256xf32, #tpu.memory_space<vmem>>, vector<1x4x256xf32>
    %34 = vector.shape_cast %33 : vector<1x4x256xf32> to vector<4x256xf32>
    %35 = vector.shape_cast %32 : vector<4x256xf32> to vector<1x4x256xf32>
    tpu.vector_store %arg6[%c0_15, %c0_16, %c0_17], %35 {strides = array<i32>} : memref<1x4x256xf32, #tpu.memory_space<vmem>>, vector<1x4x256xf32>,
    return
  }
  func.func @transform_0(%arg0: i32, %arg1: i32) -> (i32, i32, i32) {
    %c0_i32 = arith.constant 0 : i32
    %c0_i32_0 = arith.constant 0 : i32
    %c0_i32_1 = arith.constant 0 : i32
    return %arg0, %c0_i32, %c0_i32_0 : i32, i32, i32
  }
  func.func @transform_1(%arg0: i32, %arg1: i32) -> (i32, i32) {
    %c0_i32 = arith.constant 0 : i32
    %c0_i32_0 = arith.constant 0 : i32
    %c0_i32_1 = arith.constant 0 : i32
    return %c0_i32, %c0_i32_0 : i32, i32
  }
  func.func @transform_2(%arg0: i32, %arg1: i32) -> (i32, i32) {
    %c0_i32 = arith.constant 0 : i32
    %c0_i32_0 = arith.constant 0 : i32
    %c0_i32_1 = arith.constant 0 : i32
    return %c0_i32, %c0_i32_0 : i32, i32
  }
  func.func @transform_3(%arg0: i32, %arg1: i32) -> (i32, i32) {
    %c0_i32 = arith.constant 0 : i32
    %c0_i32_0 = arith.constant 0 : i32
    %c0_i32_1 = arith.constant 0 : i32
    return %c0_i32, %c0_i32_0 : i32, i32
  }
  func.func @transform_4(%arg0: i32, %arg1: i32) -> (i32, i32, i32) {
    %c0_i32 = arith.constant 0 : i32
    %c0_i32_0 = arith.constant 0 : i32
    return %arg0, %c0_i32, %arg1 : i32, i32, i32
  }
  func.func @transform_5(%arg0: i32, %arg1: i32) -> (i32, i32, i32) {
    %c0_i32 = arith.constant 0 : i32
    %c0_i32_0 = arith.constant 0 : i32
    return %arg0, %arg1, %c0_i32 : i32, i32, i32
  }
}

</mosaic_0001>

<llo_original>
// kernel: tpu_custom_call.1
$region0: #{tpu_custom_call.1}
  #allocation0 [shape = 'u32[]', space=smem, size = 0x4, offset = 0x4, fixed_abs, tag = 'smem constant byte address 0x4 - core index']
  #allocation1 [shape = 'u32[144,128]{1,0:T(1,128)}', space=vmem, size = 0x12000, scoped, tag = 'internal scratch']
  #allocation2 [shape = 'f32[8,256]{1,0:T(8,128)}', space=vmem, size = 0x2000, scoped, tag = 'scratch operand']
  #allocation3 [shape = 'f32[1,1]{1,0:T(1,128)S(6)}', space=smem, size = 0x200, scoped, tag = 'scoped memory for tpu_custom_call.1']
  %s0 = inlined_call_operand.vmem [shape: f32[2,5,256], index: 0, kind: input, shape index: {}]
  %s1 = inlined_call_operand.vmem [shape: f32[4,5], index: 1, kind: input, shape index: {}]
  %s2 = inlined_call_operand.vmem [shape: f32[8,5], index: 2, kind: input, shape index: {}]
  %s3 = inlined_call_operand.<no memory space> [shape: f32[1,1], index: 3, kind: input, shape index: {}]
  %s4 = inlined_call_operand.hbm [shape: f32[2,4,256], index: 4, kind: output, shape index: {0}]
  %s5 = inlined_call_operand.hbm [shape: f32[2,256,256], index: 5, kind: output, shape index: {1}]
  %6 = xla_tuple %s4, %s5
  %s7 = sld [smem:[#allocation0]]
  $region61: #{tpu_custom_call.1} parent=0
    _
  %s9 = ssub.s32 1, %s7
  %s10 = scalar_select 0, %s9, %s7
  %11 = sst [smem:[#allocation3]] %s3
  $region1: #{tpu_custom_call.1} parent=0
    #allocation4 [shape = 'u8[8192]{0}', space=vmem, size = 0x2000, scoped, tag = 'output window, operand 0']
    #allocation5 [shape = 's32[2]{0}', space=sflag, size = 0x8, scoped, tag = 'scoped memory for tpu_custom_call.1']
    #allocation6 [shape = 'u8[524288]{0}', space=vmem, size = 0x80000, scoped, tag = 'output window, operand 1']
    #allocation7 [shape = 's32[2]{0}', space=sflag, size = 0x8, scoped, tag = 'scoped memory for tpu_custom_call.1']
    %12 = vsyncpa [#allocation5], 0
    %s13 = scalar_lea.sflag [#allocation5], 1
    %14 = vsyncpa %s13, 0
    %15 = vsyncpa [#allocation7], 0
    %s16 = scalar_lea.sflag [#allocation7], 1
    %17 = vsyncpa %s16, 0
    loop: start=0, step=1, limit=4
    $region2: #{tpu_custom_call.1} parent=1 // loop_pre_header
      _
    $region3: #{tpu_custom_call.1} parent=1 // loop_header
      %s19 = sphi 0, %s23
      %p20 = scmp.ge.s32.totalorder %s19, 4
      %s26 = sphi 0, %s38
      %s27 = sphi 0, %s34
      %s28 = sphi 0, %s26
      %s29 = sphi 0, %s27
      %s30 = sphi 0, %s28
      %s31 = sphi 0, %s29
      %s41 = sphi 0, %s43
      %s44 = sphi 0, %s41
      %s45 = sphi 0, %s44
      %s61 = sphi 0, %s45
      %s65 = sphi 0, %s65
      %s67 = sphi 0, %s65
      %s68 = sphi 0, %s67
      %s82 = sphi 0, %s68
      %s86 = sphi 0, %s86
      %s88 = sphi 0, %s86
      %s89 = sphi 0, %s88
      %s103 = sphi 0, %s89
      %s107 = sphi 0, %s107
      %s109 = sphi 0, %s107
      %s110 = sphi 0, %s109
      %s124 = sphi 0, %s110
      %s132 = sphi 0, %s134
      %s135 = sphi 0, %s132
      %s136 = sphi 0, %s135
      %s152 = sphi 0, %s136
      %s160 = sphi 0, %s162
      %s163 = sphi 0, %s160
      %s164 = sphi 0, %s163
      %s180 = sphi 0, %s164
    $region4: #{tpu_custom_call.1} parent=1 // loop_header_branch
      %22 = sbr.rel (%p20) target = $region8
    $region5: #{tpu_custom_call.1} parent=1 // loop_body
      %s24 = ssub.s32 %s19, 1
      %s25 = ssub.s32 %s19, 2
      %s32 = sadd.s32 1, %s27
      %p33 = scmp.ge.s32.totalorder %s32, 1
      %s34 = scalar_select %p33, 0, %s32
      %s35 = sadd.s32 1, %s26
      %s36 = scalar_select %p33, %s35, %s26
      %p37 = scmp.ge.s32.totalorder %s36, 2
      %s38 = scalar_select %p37, 0, %s36
      %s39 = ssub.s32 %s26, %s38
      %p40 = scmp.eq.s32.totalorder %s39, 0
      %s42 = sadd.s32 %s41, 1
      %s43 = scalar_select %p40, %s41, %s42
      %p46 = pneg %p40
      %p47 = scmp.eq.s32.totalorder %s19, 1
      %p48 = por %p46, %p47
      %p49 = scmp.ne.s32.totalorder %s41, %s44
      %p50 = scmp.eq.s32.totalorder %s19, 0
      %p51 = por %p49, %p50
      %p52 = scmp.ne.s32.totalorder %s41, %s44
      %p53 = scmp.eq.s32.totalorder %s24, 1
      %p54 = por %p52, %p53
      %p55 = scmp.ne.s32.totalorder %s44, %s45
      %p56 = scmp.eq.s32.totalorder %s24, 0
      %p57 = por %p55, %p56
      %p58 = scmp.ne.s32.totalorder %s44, %s45
      %p59 = scmp.eq.s32.totalorder %s25, 1
      %p60 = por %p58, %p59
      %p62 = scmp.ne.s32.totalorder %s45, %s61
      %p63 = scmp.eq.s32.totalorder %s25, 0
      %p64 = por %p62, %p63
      %s66 = sadd.s32 %s65, 1
      %p69 = scmp.eq.s32.totalorder %s19, 1
      %p70 = scmp.ne.s32.totalorder %s65, %s67
      %p71 = scmp.eq.s32.totalorder %s19, 0
      %p72 = por %p70, %p71
      %p73 = scmp.ne.s32.totalorder %s65, %s67
      %p74 = scmp.eq.s32.totalorder %s24, 1
      %p75 = por %p73, %p74
      %p76 = scmp.ne.s32.totalorder %s67, %s68
      %p77 = scmp.eq.s32.totalorder %s24, 0
      %p78 = por %p76, %p77
      %p79 = scmp.ne.s32.totalorder %s67, %s68
      %p80 = scmp.eq.s32.totalorder %s25, 1
      %p81 = por %p79, %p80
      %p83 = scmp.ne.s32.totalorder %s68, %s82
      %p84 = scmp.eq.s32.totalorder %s25, 0
      %p85 = por %p83, %p84
      %s87 = sadd.s32 %s86, 1
      %p90 = scmp.eq.s32.totalorder %s19, 1
      %p91 = scmp.ne.s32.totalorder %s86, %s88
      %p92 = scmp.eq.s32.totalorder %s19, 0
      %p93 = por %p91, %p92
      %p94 = scmp.ne.s32.totalorder %s86, %s88
      %p95 = scmp.eq.s32.totalorder %s24, 1
      %p96 = por %p94, %p95
      %p97 = scmp.ne.s32.totalorder %s88, %s89
      %p98 = scmp.eq.s32.totalorder %s24, 0
      %p99 = por %p97, %p98
      %p100 = scmp.ne.s32.totalorder %s88, %s89
      %p101 = scmp.eq.s32.totalorder %s25, 1
      %p102 = por %p100, %p101
      %p104 = scmp.ne.s32.totalorder %s89, %s103
      %p105 = scmp.eq.s32.totalorder %s25, 0
      %p106 = por %p104, %p105
      %s108 = sadd.s32 %s107, 1
      %p111 = scmp.eq.s32.totalorder %s19, 1
      %p112 = scmp.ne.s32.totalorder %s107, %s109
      %p113 = scmp.eq.s32.totalorder %s19, 0
      %p114 = por %p112, %p113
      %p115 = scmp.ne.s32.totalorder %s107, %s109
      %p116 = scmp.eq.s32.totalorder %s24, 1
      %p117 = por %p115, %p116
      %p118 = scmp.ne.s32.totalorder %s109, %s110
      %p119 = scmp.eq.s32.totalorder %s24, 0
      %p120 = por %p118, %p119
      %p121 = scmp.ne.s32.totalorder %s109, %s110
      %p122 = scmp.eq.s32.totalorder %s25, 1
      %p123 = por %p121, %p122
      %p125 = scmp.ne.s32.totalorder %s110, %s124
      %p126 = scmp.eq.s32.totalorder %s25, 0
      %p127 = por %p125, %p126
      %s128 = ssub.s32 %s26, %s38
      %s129 = ssub.s32 %s27, %s34
      %s130 = sor.u32 %s128, %s129
      %p131 = scmp.eq.s32.totalorder %s130, 0
      %s133 = sadd.s32 %s132, 1
      %s134 = scalar_select %p131, %s132, %s133
      %p137 = pneg %p131
      %p138 = scmp.eq.s32.totalorder %s19, 1
      %p139 = por %p137, %p138
      %p140 = scmp.ne.s32.totalorder %s132, %s135
      %p141 = scmp.eq.s32.totalorder %s19, 0
      %p142 = por %p140, %p141
      %p143 = scmp.ne.s32.totalorder %s132, %s135
      %p144 = scmp.eq.s32.totalorder %s24, 1
      %p145 = por %p143, %p144
      %p146 = scmp.ne.s32.totalorder %s135, %s136
      %p147 = scmp.eq.s32.totalorder %s24, 0
      %p148 = por %p146, %p147
      %p149 = scmp.ne.s32.totalorder %s135, %s136
      %p150 = scmp.eq.s32.totalorder %s25, 1
      %p151 = por %p149, %p150
      %p153 = scmp.ne.s32.totalorder %s136, %s152
      %p154 = scmp.eq.s32.totalorder %s25, 0
      %p155 = por %p153, %p154
      %s156 = ssub.s32 %s26, %s38
      %s157 = ssub.s32 %s27, %s34
      %s158 = sor.u32 %s156, %s157
      %p159 = scmp.eq.s32.totalorder %s158, 0
      %s161 = sadd.s32 %s160, 1
      %s162 = scalar_select %p159, %s160, %s161
      %p165 = pneg %p159
      %p166 = scmp.eq.s32.totalorder %s19, 1
      %p167 = por %p165, %p166
      %p168 = scmp.ne.s32.totalorder %s160, %s163
      %p169 = scmp.eq.s32.totalorder %s19, 0
      %p170 = por %p168, %p169
      %p171 = scmp.ne.s32.totalorder %s160, %s163
      %p172 = scmp.eq.s32.totalorder %s24, 1
      %p173 = por %p171, %p172
      %p174 = scmp.ne.s32.totalorder %s163, %s164
      %p175 = scmp.eq.s32.totalorder %s24, 0
      %p176 = por %p174, %p175
      %p177 = scmp.ne.s32.totalorder %s163, %s164
      %p178 = scmp.eq.s32.totalorder %s25, 1
      %p179 = por %p177, %p178
      %p181 = scmp.ne.s32.totalorder %s164, %s180
      %p182 = scmp.eq.s32.totalorder %s25, 0
      %p183 = por %p181, %p182
      %p184 = scmp.le.s32.totalorder 1, %s19
      %p185 = scmp.lt.s32.totalorder %s19, 3
      %p186 = pnand %p184, %p185
      %p187 = pneg %p186
      // Predicated region
      $region9: #{tpu_custom_call.1} parent=5 // pred_check
        _
      $region10: #{tpu_custom_call.1} parent=5 // pred_check_branch
        %189 = sbr.rel (%p186) target = $region12
      $region11: #{tpu_custom_call.1} parent=5 // pred_region
        %s190 = ssub.s32 %s19, 1
        // Predicated region
        $region13: #{tpu_custom_call.1} parent=11 // pred_check
          %p191 = pneg %p78
        $region14: #{tpu_custom_call.1} parent=11 // pred_check_branch
          %193 = sbr.rel (%p191) target = $region16
        $region15: #{tpu_custom_call.1} parent=11 // pred_region
          _
        $region16: #{tpu_custom_call.1} parent=11 // pred_fallthru
          _
        // Predicated region
        $region17: #{tpu_custom_call.1} parent=11 // pred_check
          %p194 = pneg %p99
        $region18: #{tpu_custom_call.1} parent=11 // pred_check_branch
          %196 = sbr.rel (%p194) target = $region20
        $region19: #{tpu_custom_call.1} parent=11 // pred_region
          _
        $region20: #{tpu_custom_call.1} parent=11 // pred_fallthru
          _
        // Predicated region
        $region21: #{tpu_custom_call.1} parent=11 // pred_check
          %p197 = pneg %p120
        $region22: #{tpu_custom_call.1} parent=11 // pred_check_branch
          %199 = sbr.rel (%p197) target = $region24
        $region23: #{tpu_custom_call.1} parent=11 // pred_region
          _
        $region24: #{tpu_custom_call.1} parent=11 // pred_fallthru
          _
      $region12: #{tpu_custom_call.1} parent=5 // pred_fallthru
        _
      %p200 = scmp.lt.s32.totalorder %s19, 2
      // Predicated region
      $region25: #{tpu_custom_call.1} parent=5 // pred_check
        %p201 = pneg %p200
      $region26: #{tpu_custom_call.1} parent=5 // pred_check_branch
        %203 = sbr.rel (%p201) target = $region28
      $region27: #{tpu_custom_call.1} parent=5 // pred_region
        // Predicated region
        $region29: #{tpu_custom_call.1} parent=27 // pred_check
          %p204 = pneg %p51
        $region30: #{tpu_custom_call.1} parent=27 // pred_check_branch
          %206 = sbr.rel (%p204) target = $region32
        $region31: #{tpu_custom_call.1} parent=27 // pred_region
          %p207 = scmp.lt.s32.totalorder %s26, 1
          %s208 = scalar_select %p207, %s26, 1
          %s209 = smul.addr %s208, 2
          %s210 = smul.addr %s209, 8
          %s211 = scalar_lea.vmem %s0, %s210
        $region32: #{tpu_custom_call.1} parent=27 // pred_fallthru
          _
      $region28: #{tpu_custom_call.1} parent=5 // pred_fallthru
        _
      %p212 = scmp.le.s32.totalorder 1, %s19
      %p213 = scmp.lt.s32.totalorder %s19, 3
      %p214 = pnand %p212, %p213
      %p215 = pneg %p214
      // Predicated region
      $region33: #{tpu_custom_call.1} parent=5 // pred_check
        _
      $region34: #{tpu_custom_call.1} parent=5 // pred_check_branch
        %217 = sbr.rel (%p214) target = $region36
      $region35: #{tpu_custom_call.1} parent=5 // pred_region
        %s218 = ssub.s32 %s19, 1
        %p219 = scmp.lt.s32.totalorder %s28, 1
        %s220 = scalar_select %p219, %s28, 1
        %s221 = smul.addr %s220, 2
        %s222 = smul.addr %s221, 8
        %s223 = scalar_lea.vmem %s0, %s222
        %p224 = pneg %p57
        %p225 = pneg %p54
        %p226 = pneg %p78
        %p227 = pneg %p75
        %p228 = pneg %p99
        %p229 = pneg %p96
        %p230 = pneg %p120
        %p231 = pneg %p117
        %p232 = pneg %p148
        %p233 = pneg %p145
        %s234 = sand.u32 %s135, 1
        %s235 = scalar_lea.sflag [#allocation5], %s234
        %s236 = sand.u32 %s135, 1
        %s237 = smul.addr %s236, 8
        %s238 = scalar_lea.vmem [#allocation4], %s237
        %p239 = pneg %p176
        %p240 = pneg %p173
        %s241 = sand.u32 %s163, 1
        %s242 = scalar_lea.sflag [#allocation7], %s241
        %s243 = sand.u32 %s163, 1
        %s244 = smul.addr %s243, 512
        %s245 = scalar_lea.vmem [#allocation6], %s244
        %p246 = scmp.lt.s32.totalorder %s28, 1
        %s247 = scalar_select %p246, %s28, 1
        %s248 = smul.addr %s247, 2
        %s249 = smul.addr %s248, 8
        %s250 = scalar_lea.vmem %s0, %s249
        %s251 = smul.u32 2, %s29
        %s252 = smul.u32 32, %s29
        %p253 = scmp.eq.s32.totalorder %s29, 0
        // Predicated region
        $region37: #{tpu_custom_call.1} parent=35 // pred_check
          %p254 = pneg %p253
        $region38: #{tpu_custom_call.1} parent=35 // pred_check_branch
          %256 = sbr.rel (%p254) target = $region40
        $region39: #{tpu_custom_call.1} parent=35 // pred_region
          %v257 = vld [vmem:[%s2] sm:$0xff]
          %v258 = vld [vmem:[%s250] sm:$0x1f]
          %v259 = vld [vmem:[%s250 + $0x8] sm:$0x1f]
          %vm260 = vcmask 39936
          %v262 = vsel %vm260, %v257, 0
          %vm264 = vcmask 1044480
          %v266 = vsel %vm264, %v258, 0
          %v269 = vsel %vm264, %v259, 0
          %271 = vmatprep.subr.mxu0 %v269
          %272 = vmatpush1.msra.mxu0 %v266
          %273 = vmatprep.subr.mxu0 0.0
          %274 = vmatpush1.msra.mxu0 0.0
          %275 = vmatprep.subr.mxu0 0.0
          %276 = vmatpush1.msra.mxu0 0.0
          %277 = vmatprep.subr.mxu0 0.0
          %278 = vmatpush1.msra.mxu0 0.0
          %279 = vmatprep.subr.mxu0 0.0
          %280 = vmatpush1.msra.mxu0 0.0
          %281 = vmatprep.subr.mxu0 0.0
          %282 = vmatpush1.msra.mxu0 0.0
          %283 = vmatprep.subr.mxu0 0.0
          %284 = vmatpush1.msra.mxu0 0.0
          %285 = vmatprep.subr.mxu0 0.0
          %286 = vmatpush1.msra.mxu0 0.0
          %287 = vmatprep.subr.mxu0 0.0
          %288 = vmatpush1.msra.mxu0 0.0
          %289 = vmatprep.subr.mxu0 0.0
          %290 = vmatpush1.msra.mxu0 0.0
          %291 = vmatprep.subr.mxu0 0.0
          %292 = vmatpush1.msra.mxu0 0.0
          %293 = vmatprep.subr.mxu0 0.0
          %294 = vmatpush1.msra.mxu0 0.0
          %295 = vmatprep.subr.mxu0 0.0
          %296 = vmatpush1.msra.mxu0 0.0
          %297 = vmatprep.subr.mxu0 0.0
          %298 = vmatpush1.msra.mxu0 0.0
          %299 = vmatprep.subr.mxu0 0.0
          %300 = vmatpush1.msra.mxu0 0.0
          %301 = vmatprep.subr.mxu0 0.0
          %302 = vmatpush1.msra.mxu0 0.0
          %303 = vmatprep.subr.mxu0 0.0
          %304 = vmatpush1.msra.mxu0 0.0
          %305 = vmatprep.subr.mxu0 0.0
          %306 = vmatpush1.msra.mxu0 0.0
          %307 = vmatprep.subr.mxu0 0.0
          %308 = vmatpush1.msra.mxu0 0.0
          %309 = vmatprep.subr.mxu0 0.0
          %310 = vmatpush1.msra.mxu0 0.0
          %311 = vmatprep.subr.mxu0 0.0
          %312 = vmatpush1.msra.mxu0 0.0
          %313 = vmatprep.subr.mxu0 0.0
          %314 = vmatpush1.msra.mxu0 0.0
          %315 = vmatprep.subr.mxu0 0.0
          %316 = vmatpush1.msra.mxu0 0.0
          %317 = vmatprep.subr.mxu0 0.0
          %318 = vmatpush1.msra.mxu0 0.0
          %319 = vmatprep.subr.mxu0 0.0
          %320 = vmatpush1.msra.mxu0 0.0
          %321 = vmatprep.subr.mxu0 0.0
          %322 = vmatpush1.msra.mxu0 0.0
          %323 = vmatprep.subr.mxu0 0.0
          %324 = vmatpush1.msra.mxu0 0.0
          %325 = vmatprep.subr.mxu0 0.0
          %326 = vmatpush1.msra.mxu0 0.0
          %327 = vmatprep.subr.mxu0 0.0
          %328 = vmatpush1.msra.mxu0 0.0
          %329 = vmatprep.subr.mxu0 0.0
          %330 = vmatpush1.msra.mxu0 0.0
          %331 = vmatprep.subr.mxu0 0.0
          %332 = vmatpush1.msra.mxu0 0.0
          %333 = vmatprep.subr.mxu0 0.0
          %334 = vmatpush1.msra.mxu0 0.0
          %335 = vmatprep.mubr.f32.mxu0 0.0
          %336 = vmatmul.mubr.f32.gmra.mrb[0].mxu0 %v262
          %v337 = vpop.f32.mrb[0].mxu0
          %v338 = vadd.f32 0.0, %v337
          %v339 = vpop.f32.mrb[0].mxu0
          %v340 = vadd.f32 0.0, %v339
          %341 = vdwg.mxu0
          %342 = vst [vmem:[#allocation2] sm:$0xff] %v338
          %343 = vst [vmem:[#allocation2 + $0x8] sm:$0xff] %v340
        $region40: #{tpu_custom_call.1} parent=35 // pred_fallthru
          _
        %s344 = smul.u32 %s29, 256
        %s345 = sshra.s32 %s344, 7
        %s346 = sand.u32 %s344, 127
        %s347 = smul.addr %s345, 8
        %s348 = scalar_lea.vmem %s250, %s347
        %v349 = vld [vmem:[%s348] sm:$0x1f]
        %v350 = vld [vmem:[%s348 + $0x8] sm:$0x1f]
        %v351 = vld [vmem:[%s1] sm:$0xf]
        %vm352 = vcmask 39936
        %v354 = vsel %vm352, %v351, 0
        %vm356 = vcmask 1044480
        %v358 = vsel %vm356, %v349, 0
        %v361 = vsel %vm356, %v350, 0
        %363 = vmatprep.subr.mxu0 %v361
        %364 = vmatpush1.msra.mxu0 %v358
        %365 = vmatprep.subr.mxu0 0.0
        %366 = vmatpush1.msra.mxu0 0.0
        %367 = vmatprep.subr.mxu0 0.0
        %368 = vmatpush1.msra.mxu0 0.0
        %369 = vmatprep.subr.mxu0 0.0
        %370 = vmatpush1.msra.mxu0 0.0
        %371 = vmatprep.subr.mxu0 0.0
        %372 = vmatpush1.msra.mxu0 0.0
        %373 = vmatprep.subr.mxu0 0.0
        %374 = vmatpush1.msra.mxu0 0.0
        %375 = vmatprep.subr.mxu0 0.0
        %376 = vmatpush1.msra.mxu0 0.0
        %377 = vmatprep.subr.mxu0 0.0
        %378 = vmatpush1.msra.mxu0 0.0
        %379 = vmatprep.subr.mxu0 0.0
        %380 = vmatpush1.msra.mxu0 0.0
        %381 = vmatprep.subr.mxu0 0.0
        %382 = vmatpush1.msra.mxu0 0.0
        %383 = vmatprep.subr.mxu0 0.0
        %384 = vmatpush1.msra.mxu0 0.0
        %385 = vmatprep.subr.mxu0 0.0
        %386 = vmatpush1.msra.mxu0 0.0
        %387 = vmatprep.subr.mxu0 0.0
        %388 = vmatpush1.msra.mxu0 0.0
        %389 = vmatprep.subr.mxu0 0.0
        %390 = vmatpush1.msra.mxu0 0.0
        %391 = vmatprep.subr.mxu0 0.0
        %392 = vmatpush1.msra.mxu0 0.0
        %393 = vmatprep.subr.mxu0 0.0
        %394 = vmatpush1.msra.mxu0 0.0
        %395 = vmatprep.subr.mxu0 0.0
        %396 = vmatpush1.msra.mxu0 0.0
        %397 = vmatprep.subr.mxu0 0.0
        %398 = vmatpush1.msra.mxu0 0.0
        %399 = vmatprep.subr.mxu0 0.0
        %400 = vmatpush1.msra.mxu0 0.0
        %401 = vmatprep.subr.mxu0 0.0
        %402 = vmatpush1.msra.mxu0 0.0
        %403 = vmatprep.subr.mxu0 0.0
        %404 = vmatpush1.msra.mxu0 0.0
        %405 = vmatprep.subr.mxu0 0.0
        %406 = vmatpush1.msra.mxu0 0.0
        %407 = vmatprep.subr.mxu0 0.0
        %408 = vmatpush1.msra.mxu0 0.0
        %409 = vmatprep.subr.mxu0 0.0
        %410 = vmatpush1.msra.mxu0 0.0
        %411 = vmatprep.subr.mxu0 0.0
        %412 = vmatpush1.msra.mxu0 0.0
        %413 = vmatprep.subr.mxu0 0.0
        %414 = vmatpush1.msra.mxu0 0.0
        %415 = vmatprep.subr.mxu0 0.0
        %416 = vmatpush1.msra.mxu0 0.0
        %417 = vmatprep.subr.mxu0 0.0
        %418 = vmatpush1.msra.mxu0 0.0
        %419 = vmatprep.subr.mxu0 0.0
        %420 = vmatpush1.msra.mxu0 0.0
        %421 = vmatprep.subr.mxu0 0.0
        %422 = vmatpush1.msra.mxu0 0.0
        %423 = vmatprep.subr.mxu0 0.0
        %424 = vmatpush1.msra.mxu0 0.0
        %425 = vmatprep.subr.mxu0 0.0
        %426 = vmatpush1.msra.mxu0 0.0
        %427 = vmatprep.mubr.f32.mxu0 0.0
        %428 = vmatmul.mubr.f32.gmra.mrb[0].mxu0 %v354
        %v429 = vpop.f32.mrb[0].mxu0
        %v430 = vadd.f32 0.0, %v429
        %v431 = vpop.f32.mrb[0].mxu0
        %v432 = vadd.f32 0.0, %v431
        %433 = vdwg.mxu0
        %v434 = vld [vmem:[#allocation2] sm:$0xff]
        %v435 = vld [vmem:[#allocation2 + $0x8] sm:$0xff]
        %436 = vxpose.xlu0.b32.start [1/16] %v430, 128
        %437 = vxpose.xlu0.b32.cont [2/16] 0.0, 128
        %438 = vxpose.xlu0.b32.cont [3/16] 0.0, 128
        %439 = vxpose.xlu0.b32.cont [4/16] 0.0, 128
        %440 = vxpose.xlu0.b32.cont [5/16] 0.0, 128
        %441 = vxpose.xlu0.b32.cont [6/16] 0.0, 128
        %442 = vxpose.xlu0.b32.cont [7/16] 0.0, 128
        %443 = vxpose.xlu0.b32.cont [8/16] 0.0, 128
        %444 = vxpose.xlu0.b32.cont [9/16] 0.0, 128
        %445 = vxpose.xlu0.b32.cont [10/16] 0.0, 128
        %446 = vxpose.xlu0.b32.cont [11/16] 0.0, 128
        %447 = vxpose.xlu0.b32.cont [12/16] 0.0, 128
        %448 = vxpose.xlu0.b32.cont [13/16] 0.0, 128
        %449 = vxpose.xlu0.b32.cont [14/16] 0.0, 128
        %450 = vxpose.xlu0.b32.cont [15/16] 0.0, 128
        %451 = vxpose.xlu0.b32.end [16/16] 0.0, 128
        %v452 = vpop.trf.xlu0
        %v453 = vpop.trf.xlu0
        %v454 = vpop.trf.xlu0
        %v455 = vpop.trf.xlu0
        %v456 = vpop.trf.xlu0
        %v457 = vpop.trf.xlu0
        %v458 = vpop.trf.xlu0
        %v459 = vpop.trf.xlu0
        %v460 = vpop.trf.xlu0
        %v461 = vpop.trf.xlu0
        %v462 = vpop.trf.xlu0
        %v463 = vpop.trf.xlu0
        %v464 = vpop.trf.xlu0
        %v465 = vpop.trf.xlu0
        %v466 = vpop.trf.xlu0
        %v467 = vpop.trf.xlu0
        %468 = vxpose.xlu0.b32.start [1/16] %v432, 128
        %469 = vxpose.xlu0.b32.cont [2/16] 0.0, 128
        %470 = vxpose.xlu0.b32.cont [3/16] 0.0, 128
        %471 = vxpose.xlu0.b32.cont [4/16] 0.0, 128
        %472 = vxpose.xlu0.b32.cont [5/16] 0.0, 128
        %473 = vxpose.xlu0.b32.cont [6/16] 0.0, 128
        %474 = vxpose.xlu0.b32.cont [7/16] 0.0, 128
        %475 = vxpose.xlu0.b32.cont [8/16] 0.0, 128
        %476 = vxpose.xlu0.b32.cont [9/16] 0.0, 128
        %477 = vxpose.xlu0.b32.cont [10/16] 0.0, 128
        %478 = vxpose.xlu0.b32.cont [11/16] 0.0, 128
        %479 = vxpose.xlu0.b32.cont [12/16] 0.0, 128
        %480 = vxpose.xlu0.b32.cont [13/16] 0.0, 128
        %481 = vxpose.xlu0.b32.cont [14/16] 0.0, 128
        %482 = vxpose.xlu0.b32.cont [15/16] 0.0, 128
        %483 = vxpose.xlu0.b32.end [16/16] 0.0, 128
        %v484 = vpop.trf.xlu0
        %v485 = vpop.trf.xlu0
        %v486 = vpop.trf.xlu0
        %v487 = vpop.trf.xlu0
        %v488 = vpop.trf.xlu0
        %v489 = vpop.trf.xlu0
        %v490 = vpop.trf.xlu0
        %v491 = vpop.trf.xlu0
        %v492 = vpop.trf.xlu0
        %v493 = vpop.trf.xlu0
        %v494 = vpop.trf.xlu0
        %v495 = vpop.trf.xlu0
        %v496 = vpop.trf.xlu0
        %v497 = vpop.trf.xlu0
        %v498 = vpop.trf.xlu0
        %v499 = vpop.trf.xlu0
        %vm500 = vcmask 31744
        %v502 = vsel %vm500, %v452, 0
        %v505 = vsel %vm500, %v453, 0
        %v508 = vsel %vm500, %v454, 0
        %v511 = vsel %vm500, %v455, 0
        %v514 = vsel %vm500, %v456, 0
        %v517 = vsel %vm500, %v457, 0
        %v520 = vsel %vm500, %v458, 0
        %v523 = vsel %vm500, %v459, 0
        %v526 = vsel %vm500, %v460, 0
        %v529 = vsel %vm500, %v461, 0
        %v532 = vsel %vm500, %v462, 0
        %v535 = vsel %vm500, %v463, 0
        %v538 = vsel %vm500, %v464, 0
        %v541 = vsel %vm500, %v465, 0
        %v544 = vsel %vm500, %v466, 0
        %v547 = vsel %vm500, %v467, 0
        %v550 = vsel %vm500, %v484, 0
        %v553 = vsel %vm500, %v485, 0
        %v556 = vsel %vm500, %v486, 0
        %v559 = vsel %vm500, %v487, 0
        %v562 = vsel %vm500, %v488, 0
        %v565 = vsel %vm500, %v489, 0
        %v568 = vsel %vm500, %v490, 0
        %v571 = vsel %vm500, %v491, 0
        %v574 = vsel %vm500, %v492, 0
        %v577 = vsel %vm500, %v493, 0
        %v580 = vsel %vm500, %v494, 0
        %v583 = vsel %vm500, %v495, 0
        %v586 = vsel %vm500, %v496, 0
        %v589 = vsel %vm500, %v497, 0
        %v592 = vsel %vm500, %v498, 0
        %v595 = vsel %vm500, %v499, 0
        %vm597 = vcmask 1043456
        %v599 = vsel %vm597, %v434, 0
        %v602 = vsel %vm597, %v435, 0
        %604 = vmatprep.subr.mxu0 %v602
        %605 = vmatpush1.msra.mxu0 %v599
        %606 = vmatprep.subr.mxu0 0.0
        %607 = vmatpush1.msra.mxu0 0.0
        %608 = vmatprep.subr.mxu0 0.0
        %609 = vmatpush1.msra.mxu0 0.0
        %610 = vmatprep.subr.mxu0 0.0
        %611 = vmatpush1.msra.mxu0 0.0
        %612 = vmatprep.subr.mxu0 0.0
        %613 = vmatpush1.msra.mxu0 0.0
        %614 = vmatprep.subr.mxu0 0.0
        %615 = vmatpush1.msra.mxu0 0.0
        %616 = vmatprep.subr.mxu0 0.0
        %617 = vmatpush1.msra.mxu0 0.0
        %618 = vmatprep.subr.mxu0 0.0
        %619 = vmatpush1.msra.mxu0 0.0
        %620 = vmatprep.subr.mxu0 0.0
        %621 = vmatpush1.msra.mxu0 0.0
        %622 = vmatprep.subr.mxu0 0.0
        %623 = vmatpush1.msra.mxu0 0.0
        %624 = vmatprep.subr.mxu0 0.0
        %625 = vmatpush1.msra.mxu0 0.0
        %626 = vmatprep.subr.mxu0 0.0
        %627 = vmatpush1.msra.mxu0 0.0
        %628 = vmatprep.subr.mxu0 0.0
        %629 = vmatpush1.msra.mxu0 0.0
        %630 = vmatprep.subr.mxu0 0.0
        %631 = vmatpush1.msra.mxu0 0.0
        %632 = vmatprep.subr.mxu0 0.0
        %633 = vmatpush1.msra.mxu0 0.0
        %634 = vmatprep.subr.mxu0 0.0
        %635 = vmatpush1.msra.mxu0 0.0
        %636 = vmatprep.subr.mxu0 0.0
        %637 = vmatpush1.msra.mxu0 0.0
        %638 = vmatprep.subr.mxu0 0.0
        %639 = vmatpush1.msra.mxu0 0.0
        %640 = vmatprep.subr.mxu0 0.0
        %641 = vmatpush1.msra.mxu0 0.0
        %642 = vmatprep.subr.mxu0 0.0
        %643 = vmatpush1.msra.mxu0 0.0
        %644 = vmatprep.subr.mxu0 0.0
        %645 = vmatpush1.msra.mxu0 0.0
        %646 = vmatprep.subr.mxu0 0.0
        %647 = vmatpush1.msra.mxu0 0.0
        %648 = vmatprep.subr.mxu0 0.0
        %649 = vmatpush1.msra.mxu0 0.0
        %650 = vmatprep.subr.mxu0 0.0
        %651 = vmatpush1.msra.mxu0 0.0
        %652 = vmatprep.subr.mxu0 0.0
        %653 = vmatpush1.msra.mxu0 0.0
        %654 = vmatprep.subr.mxu0 0.0
        %655 = vmatpush1.msra.mxu0 0.0
        %656 = vmatprep.subr.mxu0 0.0
        %657 = vmatpush1.msra.mxu0 0.0
        %658 = vmatprep.subr.mxu0 0.0
        %659 = vmatpush1.msra.mxu0 0.0
        %660 = vmatprep.subr.mxu0 0.0
        %661 = vmatpush1.msra.mxu0 0.0
        %662 = vmatprep.subr.mxu0 0.0
        %663 = vmatpush1.msra.mxu0 0.0
        %664 = vmatprep.subr.mxu0 0.0
        %665 = vmatpush1.msra.mxu0 0.0
        %666 = vmatprep.subr.mxu0 0.0
        %667 = vmatpush1.msra.mxu0 0.0
        %668 = vmatprep.mubr.f32.mxu0 0.0
        %669 = vmatmul.mubr.f32.gmra.mrb[0].mxu0 %v502
        %v670 = vpop.f32.mrb[0].mxu0
        %v671 = vadd.f32 0.0, %v670
        %v672 = vpop.f32.mrb[0].mxu0
        %v673 = vadd.f32 0.0, %v672
        %674 = vmatprep.mubr.f32.mxu0 0.0
        %675 = vmatmul.mubr.f32.gmra.mrb[0].mxu0 %v505
        %v676 = vpop.f32.mrb[0].mxu0
        %v677 = vadd.f32 0.0, %v676
        %v678 = vpop.f32.mrb[0].mxu0
        %v679 = vadd.f32 0.0, %v678
        %680 = vmatprep.mubr.f32.mxu0 0.0
        %681 = vmatmul.mubr.f32.gmra.mrb[0].mxu0 %v508
        %v682 = vpop.f32.mrb[0].mxu0
        %v683 = vadd.f32 0.0, %v682
        %v684 = vpop.f32.mrb[0].mxu0
        %v685 = vadd.f32 0.0, %v684
        %686 = vmatprep.mubr.f32.mxu0 0.0
        %687 = vmatmul.mubr.f32.gmra.mrb[0].mxu0 %v511
        %v688 = vpop.f32.mrb[0].mxu0
        %v689 = vadd.f32 0.0, %v688
        %v690 = vpop.f32.mrb[0].mxu0
        %v691 = vadd.f32 0.0, %v690
        %692 = vmatprep.mubr.f32.mxu0 0.0
        %693 = vmatmul.mubr.f32.gmra.mrb[0].mxu0 %v514
        %v694 = vpop.f32.mrb[0].mxu0
        %v695 = vadd.f32 0.0, %v694
        %v696 = vpop.f32.mrb[0].mxu0
        %v697 = vadd.f32 0.0, %v696
        %698 = vmatprep.mubr.f32.mxu0 0.0
        %699 = vmatmul.mubr.f32.gmra.mrb[0].mxu0 %v517
        %v700 = vpop.f32.mrb[0].mxu0
        %v701 = vadd.f32 0.0, %v700
        %v702 = vpop.f32.mrb[0].mxu0
        %v703 = vadd.f32 0.0, %v702
        %704 = vmatprep.mubr.f32.mxu0 0.0
        %705 = vmatmul.mubr.f32.gmra.mrb[0].mxu0 %v520
        %v706 = vpop.f32.mrb[0].mxu0
        %v707 = vadd.f32 0.0, %v706
        %v708 = vpop.f32.mrb[0].mxu0
        %v709 = vadd.f32 0.0, %v708
        %710 = vmatprep.mubr.f32.mxu0 0.0
        %711 = vmatmul.mubr.f32.gmra.mrb[0].mxu0 %v523
        %v712 = vpop.f32.mrb[0].mxu0
        %v713 = vadd.f32 0.0, %v712
        %v714 = vpop.f32.mrb[0].mxu0
        %v715 = vadd.f32 0.0, %v714
        %716 = vmatprep.mubr.f32.mxu0 0.0
        %717 = vmatmul.mubr.f32.gmra.mrb[0].mxu0 %v526
        %v718 = vpop.f32.mrb[0].mxu0
        %v719 = vadd.f32 0.0, %v718
        %v720 = vpop.f32.mrb[0].mxu0
        %v721 = vadd.f32 0.0, %v720
        %722 = vmatprep.mubr.f32.mxu0 0.0
        %723 = vmatmul.mubr.f32.gmra.mrb[0].mxu0 %v529
        %v724 = vpop.f32.mrb[0].mxu0
        %v725 = vadd.f32 0.0, %v724
        %v726 = vpop.f32.mrb[0].mxu0
        %v727 = vadd.f32 0.0, %v726
        %728 = vmatprep.mubr.f32.mxu0 0.0
        %729 = vmatmul.mubr.f32.gmra.mrb[0].mxu0 %v532
        %v730 = vpop.f32.mrb[0].mxu0
        %v731 = vadd.f32 0.0, %v730
        %v732 = vpop.f32.mrb[0].mxu0
        %v733 = vadd.f32 0.0, %v732
        %734 = vmatprep.mubr.f32.mxu0 0.0
        %735 = vmatmul.mubr.f32.gmra.mrb[0].mxu0 %v535
        %v736 = vpop.f32.mrb[0].mxu0
        %v737 = vadd.f32 0.0, %v736
        %v738 = vpop.f32.mrb[0].mxu0
        %v739 = vadd.f32 0.0, %v738
        %740 = vmatprep.mubr.f32.mxu0 0.0
        %741 = vmatmul.mubr.f32.gmra.mrb[0].mxu0 %v538
        %v742 = vpop.f32.mrb[0].mxu0
        %v743 = vadd.f32 0.0, %v742
        %v744 = vpop.f32.mrb[0].mxu0
        %v745 = vadd.f32 0.0, %v744
        %746 = vmatprep.mubr.f32.mxu0 0.0
        %747 = vmatmul.mubr.f32.gmra.mrb[0].mxu0 %v541
        %v748 = vpop.f32.mrb[0].mxu0
        %v749 = vadd.f32 0.0, %v748
        %v750 = vpop.f32.mrb[0].mxu0
        %v751 = vadd.f32 0.0, %v750
        %752 = vmatprep.mubr.f32.mxu0 0.0
        %753 = vmatmul.mubr.f32.gmra.mrb[0].mxu0 %v544
        %v754 = vpop.f32.mrb[0].mxu0
        %v755 = vadd.f32 0.0, %v754
        %v756 = vpop.f32.mrb[0].mxu0
        %v757 = vadd.f32 0.0, %v756
        %758 = vmatprep.mubr.f32.mxu0 0.0
        %759 = vmatmul.mubr.f32.gmra.mrb[0].mxu0 %v547
        %v760 = vpop.f32.mrb[0].mxu0
        %v761 = vadd.f32 0.0, %v760
        %v762 = vpop.f32.mrb[0].mxu0
        %v763 = vadd.f32 0.0, %v762
        %764 = vmatprep.mubr.f32.mxu0 0.0
        %765 = vmatmul.mubr.f32.gmra.mrb[0].mxu0 %v550
        %v766 = vpop.f32.mrb[0].mxu0
        %v767 = vadd.f32 0.0, %v766
        %v768 = vpop.f32.mrb[0].mxu0
        %v769 = vadd.f32 0.0, %v768
        %770 = vmatprep.mubr.f32.mxu0 0.0
        %771 = vmatmul.mubr.f32.gmra.mrb[0].mxu0 %v553
        %v772 = vpop.f32.mrb[0].mxu0
        %v773 = vadd.f32 0.0, %v772
        %v774 = vpop.f32.mrb[0].mxu0
        %v775 = vadd.f32 0.0, %v774
        %776 = vmatprep.mubr.f32.mxu0 0.0
        %777 = vmatmul.mubr.f32.gmra.mrb[0].mxu0 %v556
        %v778 = vpop.f32.mrb[0].mxu0
        %v779 = vadd.f32 0.0, %v778
        %v780 = vpop.f32.mrb[0].mxu0
        %v781 = vadd.f32 0.0, %v780
        %782 = vmatprep.mubr.f32.mxu0 0.0
        %783 = vmatmul.mubr.f32.gmra.mrb[0].mxu0 %v559
        %v784 = vpop.f32.mrb[0].mxu0
        %v785 = vadd.f32 0.0, %v784
        %v786 = vpop.f32.mrb[0].mxu0
        %v787 = vadd.f32 0.0, %v786
        %788 = vmatprep.mubr.f32.mxu0 0.0
        %789 = vmatmul.mubr.f32.gmra.mrb[0].mxu0 %v562
        %v790 = vpop.f32.mrb[0].mxu0
        %v791 = vadd.f32 0.0, %v790
        %v792 = vpop.f32.mrb[0].mxu0
        %v793 = vadd.f32 0.0, %v792
        %794 = vmatprep.mubr.f32.mxu0 0.0
        %795 = vmatmul.mubr.f32.gmra.mrb[0].mxu0 %v565
        %v796 = vpop.f32.mrb[0].mxu0
        %v797 = vadd.f32 0.0, %v796
        %v798 = vpop.f32.mrb[0].mxu0
        %v799 = vadd.f32 0.0, %v798
        %800 = vmatprep.mubr.f32.mxu0 0.0
        %801 = vmatmul.mubr.f32.gmra.mrb[0].mxu0 %v568
        %v802 = vpop.f32.mrb[0].mxu0
        %v803 = vadd.f32 0.0, %v802
        %v804 = vpop.f32.mrb[0].mxu0
        %v805 = vadd.f32 0.0, %v804
        %806 = vmatprep.mubr.f32.mxu0 0.0
        %807 = vmatmul.mubr.f32.gmra.mrb[0].mxu0 %v571
        %v808 = vpop.f32.mrb[0].mxu0
        %v809 = vadd.f32 0.0, %v808
        %v810 = vpop.f32.mrb[0].mxu0
        %v811 = vadd.f32 0.0, %v810
        %812 = vmatprep.mubr.f32.mxu0 0.0
        %813 = vmatmul.mubr.f32.gmra.mrb[0].mxu0 %v574
        %v814 = vpop.f32.mrb[0].mxu0
        %v815 = vadd.f32 0.0, %v814
        %v816 = vpop.f32.mrb[0].mxu0
        %v817 = vadd.f32 0.0, %v816
        %818 = vmatprep.mubr.f32.mxu0 0.0
        %819 = vmatmul.mubr.f32.gmra.mrb[0].mxu0 %v577
        %v820 = vpop.f32.mrb[0].mxu0
        %v821 = vadd.f32 0.0, %v820
        %v822 = vpop.f32.mrb[0].mxu0
        %v823 = vadd.f32 0.0, %v822
        %824 = vmatprep.mubr.f32.mxu0 0.0
        %825 = vmatmul.mubr.f32.gmra.mrb[0].mxu0 %v580
        %v826 = vpop.f32.mrb[0].mxu0
        %v827 = vadd.f32 0.0, %v826
        %v828 = vpop.f32.mrb[0].mxu0
        %v829 = vadd.f32 0.0, %v828
        %830 = vmatprep.mubr.f32.mxu0 0.0
        %831 = vmatmul.mubr.f32.gmra.mrb[0].mxu0 %v583
        %v832 = vpop.f32.mrb[0].mxu0
        %v833 = vadd.f32 0.0, %v832
        %v834 = vpop.f32.mrb[0].mxu0
        %v835 = vadd.f32 0.0, %v834
        %836 = vmatprep.mubr.f32.mxu0 0.0
        %837 = vmatmul.mubr.f32.gmra.mrb[0].mxu0 %v586
        %v838 = vpop.f32.mrb[0].mxu0
        %v839 = vadd.f32 0.0, %v838
        %v840 = vpop.f32.mrb[0].mxu0
        %v841 = vadd.f32 0.0, %v840
        %842 = vmatprep.mubr.f32.mxu0 0.0
        %843 = vmatmul.mubr.f32.gmra.mrb[0].mxu0 %v589
        %v844 = vpop.f32.mrb[0].mxu0
        %v845 = vadd.f32 0.0, %v844
        %v846 = vpop.f32.mrb[0].mxu0
        %v847 = vadd.f32 0.0, %v846
        %848 = vmatprep.mubr.f32.mxu0 0.0
        %849 = vmatmul.mubr.f32.gmra.mrb[0].mxu0 %v592
        %v850 = vpop.f32.mrb[0].mxu0
        %v851 = vadd.f32 0.0, %v850
        %v852 = vpop.f32.mrb[0].mxu0
        %v853 = vadd.f32 0.0, %v852
        %854 = vmatprep.mubr.f32.mxu0 0.0
        %855 = vmatmul.mubr.f32.gmra.mrb[0].mxu0 %v595
        %v856 = vpop.f32.mrb[0].mxu0
        %v857 = vadd.f32 0.0, %v856
        %v858 = vpop.f32.mrb[0].mxu0
        %v859 = vadd.f32 0.0, %v858
        %860 = vdwg.mxu0
        %v861 = vmax.f32 %v671, %v673
        %862 = vmax.xlane.f32.xlu0 %v861
        %v863 = vpop.xlane.xlu0 %862
        %v864 = vmax.f32 %v677, %v679
        %865 = vmax.xlane.f32.xlu0 %v864
        %v866 = vpop.xlane.xlu0 %865
        %v867 = vmax.f32 %v683, %v685
        %868 = vmax.xlane.f32.xlu0 %v867
        %v869 = vpop.xlane.xlu0 %868
        %v870 = vmax.f32 %v689, %v691
        %871 = vmax.xlane.f32.xlu0 %v870
        %v872 = vpop.xlane.xlu0 %871
        %v873 = vmax.f32 %v695, %v697
        %874 = vmax.xlane.f32.xlu0 %v873
        %v875 = vpop.xlane.xlu0 %874
        %v876 = vmax.f32 %v701, %v703
        %877 = vmax.xlane.f32.xlu0 %v876
        %v878 = vpop.xlane.xlu0 %877
        %v879 = vmax.f32 %v707, %v709
        %880 = vmax.xlane.f32.xlu0 %v879
        %v881 = vpop.xlane.xlu0 %880
        %v882 = vmax.f32 %v713, %v715
        %883 = vmax.xlane.f32.xlu0 %v882
        %v884 = vpop.xlane.xlu0 %883
        %v885 = vmax.f32 %v719, %v721
        %886 = vmax.xlane.f32.xlu0 %v885
        %v887 = vpop.xlane.xlu0 %886
        %v888 = vmax.f32 %v725, %v727
        %889 = vmax.xlane.f32.xlu0 %v888
        %v890 = vpop.xlane.xlu0 %889
        %v891 = vmax.f32 %v731, %v733
        %892 = vmax.xlane.f32.xlu0 %v891
        %v893 = vpop.xlane.xlu0 %892
        %v894 = vmax.f32 %v737, %v739
        %895 = vmax.xlane.f32.xlu0 %v894
        %v896 = vpop.xlane.xlu0 %895
        %v897 = vmax.f32 %v743, %v745
        %898 = vmax.xlane.f32.xlu0 %v897
        %v899 = vpop.xlane.xlu0 %898
        %v900 = vmax.f32 %v749, %v751
        %901 = vmax.xlane.f32.xlu0 %v900
        %v902 = vpop.xlane.xlu0 %901
        %v903 = vmax.f32 %v755, %v757
        %904 = vmax.xlane.f32.xlu0 %v903
        %v905 = vpop.xlane.xlu0 %904
        %v906 = vmax.f32 %v761, %v763
        %907 = vmax.xlane.f32.xlu0 %v906
        %v908 = vpop.xlane.xlu0 %907
        %v909 = vmax.f32 %v767, %v769
        %910 = vmax.xlane.f32.xlu0 %v909
        %v911 = vpop.xlane.xlu0 %910
        %v912 = vmax.f32 %v773, %v775
        %913 = vmax.xlane.f32.xlu0 %v912
        %v914 = vpop.xlane.xlu0 %913
        %v915 = vmax.f32 %v779, %v781
        %916 = vmax.xlane.f32.xlu0 %v915
        %v917 = vpop.xlane.xlu0 %916
        %v918 = vmax.f32 %v785, %v787
        %919 = vmax.xlane.f32.xlu0 %v918
        %v920 = vpop.xlane.xlu0 %919
        %v921 = vmax.f32 %v791, %v793
        %922 = vmax.xlane.f32.xlu0 %v921
        %v923 = vpop.xlane.xlu0 %922
        %v924 = vmax.f32 %v797, %v799
        %925 = vmax.xlane.f32.xlu0 %v924
        %v926 = vpop.xlane.xlu0 %925
        %v927 = vmax.f32 %v803, %v805
        %928 = vmax.xlane.f32.xlu0 %v927
        %v929 = vpop.xlane.xlu0 %928
        %v930 = vmax.f32 %v809, %v811
        %931 = vmax.xlane.f32.xlu0 %v930
        %v932 = vpop.xlane.xlu0 %931
        %v933 = vmax.f32 %v815, %v817
        %934 = vmax.xlane.f32.xlu0 %v933
        %v935 = vpop.xlane.xlu0 %934
        %v936 = vmax.f32 %v821, %v823
        %937 = vmax.xlane.f32.xlu0 %v936
        %v938 = vpop.xlane.xlu0 %937
        %v939 = vmax.f32 %v827, %v829
        %940 = vmax.xlane.f32.xlu0 %v939
        %v941 = vpop.xlane.xlu0 %940
        %v942 = vmax.f32 %v833, %v835
        %943 = vmax.xlane.f32.xlu0 %v942
        %v944 = vpop.xlane.xlu0 %943
        %v945 = vmax.f32 %v839, %v841
        %946 = vmax.xlane.f32.xlu0 %v945
        %v947 = vpop.xlane.xlu0 %946
        %v948 = vmax.f32 %v845, %v847
        %949 = vmax.xlane.f32.xlu0 %v948
        %v950 = vpop.xlane.xlu0 %949
        %v951 = vmax.f32 %v851, %v853
        %952 = vmax.xlane.f32.xlu0 %v951
        %v953 = vpop.xlane.xlu0 %952
        %v954 = vmax.f32 %v857, %v859
        %955 = vmax.xlane.f32.xlu0 %v954
        %v956 = vpop.xlane.xlu0 %955
        %v957 = vsub.f32 %v671, %v863
        %v958 = vsub.f32 %v673, %v863
        %v959 = vsub.f32 %v677, %v866
        %v960 = vsub.f32 %v679, %v866
        %v961 = vsub.f32 %v683, %v869
        %v962 = vsub.f32 %v685, %v869
        %v963 = vsub.f32 %v689, %v872
        %v964 = vsub.f32 %v691, %v872
        %v965 = vsub.f32 %v695, %v875
        %v966 = vsub.f32 %v697, %v875
        %v967 = vsub.f32 %v701, %v878
        %v968 = vsub.f32 %v703, %v878
        %v969 = vsub.f32 %v707, %v881
        %v970 = vsub.f32 %v709, %v881
        %v971 = vsub.f32 %v713, %v884
        %v972 = vsub.f32 %v715, %v884
        %v973 = vsub.f32 %v719, %v887
        %v974 = vsub.f32 %v721, %v887
        %v975 = vsub.f32 %v725, %v890
        %v976 = vsub.f32 %v727, %v890
        %v977 = vsub.f32 %v731, %v893
        %v978 = vsub.f32 %v733, %v893
        %v979 = vsub.f32 %v737, %v896
        %v980 = vsub.f32 %v739, %v896
        %v981 = vsub.f32 %v743, %v899
        %v982 = vsub.f32 %v745, %v899
        %v983 = vsub.f32 %v749, %v902
        %v984 = vsub.f32 %v751, %v902
        %v985 = vsub.f32 %v755, %v905
        %v986 = vsub.f32 %v757, %v905
        %v987 = vsub.f32 %v761, %v908
        %v988 = vsub.f32 %v763, %v908
        %v989 = vsub.f32 %v767, %v911
        %v990 = vsub.f32 %v769, %v911
        %v991 = vsub.f32 %v773, %v914
        %v992 = vsub.f32 %v775, %v914
        %v993 = vsub.f32 %v779, %v917
        %v994 = vsub.f32 %v781, %v917
        %v995 = vsub.f32 %v785, %v920
        %v996 = vsub.f32 %v787, %v920
        %v997 = vsub.f32 %v791, %v923
        %v998 = vsub.f32 %v793, %v923
        %v999 = vsub.f32 %v797, %v926
        %v1000 = vsub.f32 %v799, %v926
        %v1001 = vsub.f32 %v803, %v929
        %v1002 = vsub.f32 %v805, %v929
        %v1003 = vsub.f32 %v809, %v932
        %v1004 = vsub.f32 %v811, %v932
        %v1005 = vsub.f32 %v815, %v935
        %v1006 = vsub.f32 %v817, %v935
        %v1007 = vsub.f32 %v821, %v938
        %v1008 = vsub.f32 %v823, %v938
        %v1009 = vsub.f32 %v827, %v941
        %v1010 = vsub.f32 %v829, %v941
        %v1011 = vsub.f32 %v833, %v944
        %v1012 = vsub.f32 %v835, %v944
        %v1013 = vsub.f32 %v839, %v947
        %v1014 = vsub.f32 %v841, %v947
        %v1015 = vsub.f32 %v845, %v950
        %v1016 = vsub.f32 %v847, %v950
        %v1017 = vsub.f32 %v851, %v953
        %v1018 = vsub.f32 %v853, %v953
        %v1019 = vsub.f32 %v857, %v956
        %v1020 = vsub.f32 %v859, %v956
        %v1021 = vmul.f32 %v957, 1.442695
        %v1022 = vpow.pop %v1021
        %v1023 = vmul.f32 %v958, 1.442695
        %v1024 = vpow.pop %v1023
        %v1025 = vmul.f32 %v959, 1.442695
        %v1026 = vpow.pop %v1025
        %v1027 = vmul.f32 %v960, 1.442695
        %v1028 = vpow.pop %v1027
        %v1029 = vmul.f32 %v961, 1.442695
        %v1030 = vpow.pop %v1029
        %v1031 = vmul.f32 %v962, 1.442695
        %v1032 = vpow.pop %v1031
        %v1033 = vmul.f32 %v963, 1.442695
        %v1034 = vpow.pop %v1033
        %v1035 = vmul.f32 %v964, 1.442695
        %v1036 = vpow.pop %v1035
        %v1037 = vmul.f32 %v965, 1.442695
        %v1038 = vpow.pop %v1037
        %v1039 = vmul.f32 %v966, 1.442695
        %v1040 = vpow.pop %v1039
        %v1041 = vmul.f32 %v967, 1.442695
        %v1042 = vpow.pop %v1041
        %v1043 = vmul.f32 %v968, 1.442695
        %v1044 = vpow.pop %v1043
        %v1045 = vmul.f32 %v969, 1.442695
        %v1046 = vpow.pop %v1045
        %v1047 = vmul.f32 %v970, 1.442695
        %v1048 = vpow.pop %v1047
        %v1049 = vmul.f32 %v971, 1.442695
        %v1050 = vpow.pop %v1049
        %v1051 = vmul.f32 %v972, 1.442695
        %v1052 = vpow.pop %v1051
        %v1053 = vmul.f32 %v973, 1.442695
        %v1054 = vpow.pop %v1053
        %v1055 = vmul.f32 %v974, 1.442695
        %v1056 = vpow.pop %v1055
        %v1057 = vmul.f32 %v975, 1.442695
        %v1058 = vpow.pop %v1057
        %v1059 = vmul.f32 %v976, 1.442695
        %v1060 = vpow.pop %v1059
        %v1061 = vmul.f32 %v977, 1.442695
        %v1062 = vpow.pop %v1061
        %v1063 = vmul.f32 %v978, 1.442695
        %v1064 = vpow.pop %v1063
        %v1065 = vmul.f32 %v979, 1.442695
        %v1066 = vpow.pop %v1065
        %v1067 = vmul.f32 %v980, 1.442695
        %v1068 = vpow.pop %v1067
        %v1069 = vmul.f32 %v981, 1.442695
        %v1070 = vpow.pop %v1069
        %v1071 = vmul.f32 %v982, 1.442695
        %v1072 = vpow.pop %v1071
        %v1073 = vmul.f32 %v983, 1.442695
        %v1074 = vpow.pop %v1073
        %v1075 = vmul.f32 %v984, 1.442695
        %v1076 = vpow.pop %v1075
        %v1077 = vmul.f32 %v985, 1.442695
        %v1078 = vpow.pop %v1077
        %v1079 = vmul.f32 %v986, 1.442695
        %v1080 = vpow.pop %v1079
        %v1081 = vmul.f32 %v987, 1.442695
        %v1082 = vpow.pop %v1081
        %v1083 = vmul.f32 %v988, 1.442695
        %v1084 = vpow.pop %v1083
        %v1085 = vmul.f32 %v989, 1.442695
        %v1086 = vpow.pop %v1085
        %v1087 = vmul.f32 %v990, 1.442695
        %v1088 = vpow.pop %v1087
        %v1089 = vmul.f32 %v991, 1.442695
        %v1090 = vpow.pop %v1089
        %v1091 = vmul.f32 %v992, 1.442695
        %v1092 = vpow.pop %v1091
        %v1093 = vmul.f32 %v993, 1.442695
        %v1094 = vpow.pop %v1093
        %v1095 = vmul.f32 %v994, 1.442695
        %v1096 = vpow.pop %v1095
        %v1097 = vmul.f32 %v995, 1.442695
        %v1098 = vpow.pop %v1097
        %v1099 = vmul.f32 %v996, 1.442695
        %v1100 = vpow.pop %v1099
        %v1101 = vmul.f32 %v997, 1.442695
        %v1102 = vpow.pop %v1101
        %v1103 = vmul.f32 %v998, 1.442695
        %v1104 = vpow.pop %v1103
        %v1105 = vmul.f32 %v999, 1.442695
        %v1106 = vpow.pop %v1105
        %v1107 = vmul.f32 %v1000, 1.442695
        %v1108 = vpow.pop %v1107
        %v1109 = vmul.f32 %v1001, 1.442695
        %v1110 = vpow.pop %v1109
        %v1111 = vmul.f32 %v1002, 1.442695
        %v1112 = vpow.pop %v1111
        %v1113 = vmul.f32 %v1003, 1.442695
        %v1114 = vpow.pop %v1113
        %v1115 = vmul.f32 %v1004, 1.442695
        %v1116 = vpow.pop %v1115
        %v1117 = vmul.f32 %v1005, 1.442695
        %v1118 = vpow.pop %v1117
        %v1119 = vmul.f32 %v1006, 1.442695
        %v1120 = vpow.pop %v1119
        %v1121 = vmul.f32 %v1007, 1.442695
        %v1122 = vpow.pop %v1121
        %v1123 = vmul.f32 %v1008, 1.442695
        %v1124 = vpow.pop %v1123
        %v1125 = vmul.f32 %v1009, 1.442695
        %v1126 = vpow.pop %v1125
        %v1127 = vmul.f32 %v1010, 1.442695
        %v1128 = vpow.pop %v1127
        %v1129 = vmul.f32 %v1011, 1.442695
        %v1130 = vpow.pop %v1129
        %v1131 = vmul.f32 %v1012, 1.442695
        %v1132 = vpow.pop %v1131
        %v1133 = vmul.f32 %v1013, 1.442695
        %v1134 = vpow.pop %v1133
        %v1135 = vmul.f32 %v1014, 1.442695
        %v1136 = vpow.pop %v1135
        %v1137 = vmul.f32 %v1015, 1.442695
        %v1138 = vpow.pop %v1137
        %v1139 = vmul.f32 %v1016, 1.442695
        %v1140 = vpow.pop %v1139
        %v1141 = vmul.f32 %v1017, 1.442695
        %v1142 = vpow.pop %v1141
        %v1143 = vmul.f32 %v1018, 1.442695
        %v1144 = vpow.pop %v1143
        %v1145 = vmul.f32 %v1019, 1.442695
        %v1146 = vpow.pop %v1145
        %v1147 = vmul.f32 %v1020, 1.442695
        %v1148 = vpow.pop %v1147
        %v1149 = vadd.f32 %v1022, %v1024
        %1150 = vadd.xlane.f32.xlu0 %v1149
        %v1151 = vpop.xlane.xlu0 %1150
        %v1152 = vadd.f32 %v1026, %v1028
        %1153 = vadd.xlane.f32.xlu0 %v1152
        %v1154 = vpop.xlane.xlu0 %1153
        %v1155 = vadd.f32 %v1030, %v1032
        %1156 = vadd.xlane.f32.xlu0 %v1155
        %v1157 = vpop.xlane.xlu0 %1156
        %v1158 = vadd.f32 %v1034, %v1036
        %1159 = vadd.xlane.f32.xlu0 %v1158
        %v1160 = vpop.xlane.xlu0 %1159
        %v1161 = vadd.f32 %v1038, %v1040
        %1162 = vadd.xlane.f32.xlu0 %v1161
        %v1163 = vpop.xlane.xlu0 %1162
        %v1164 = vadd.f32 %v1042, %v1044
        %1165 = vadd.xlane.f32.xlu0 %v1164
        %v1166 = vpop.xlane.xlu0 %1165
        %v1167 = vadd.f32 %v1046, %v1048
        %1168 = vadd.xlane.f32.xlu0 %v1167
        %v1169 = vpop.xlane.xlu0 %1168
        %v1170 = vadd.f32 %v1050, %v1052
        %1171 = vadd.xlane.f32.xlu0 %v1170
        %v1172 = vpop.xlane.xlu0 %1171
        %v1173 = vadd.f32 %v1054, %v1056
        %1174 = vadd.xlane.f32.xlu0 %v1173
        %v1175 = vpop.xlane.xlu0 %1174
        %v1176 = vadd.f32 %v1058, %v1060
        %1177 = vadd.xlane.f32.xlu0 %v1176
        %v1178 = vpop.xlane.xlu0 %1177
        %v1179 = vadd.f32 %v1062, %v1064
        %1180 = vadd.xlane.f32.xlu0 %v1179
        %v1181 = vpop.xlane.xlu0 %1180
        %v1182 = vadd.f32 %v1066, %v1068
        %1183 = vadd.xlane.f32.xlu0 %v1182
        %v1184 = vpop.xlane.xlu0 %1183
        %v1185 = vadd.f32 %v1070, %v1072
        %1186 = vadd.xlane.f32.xlu0 %v1185
        %v1187 = vpop.xlane.xlu0 %1186
        %v1188 = vadd.f32 %v1074, %v1076
        %1189 = vadd.xlane.f32.xlu0 %v1188
        %v1190 = vpop.xlane.xlu0 %1189
        %v1191 = vadd.f32 %v1078, %v1080
        %1192 = vadd.xlane.f32.xlu0 %v1191
        %v1193 = vpop.xlane.xlu0 %1192
        %v1194 = vadd.f32 %v1082, %v1084
        %1195 = vadd.xlane.f32.xlu0 %v1194
        %v1196 = vpop.xlane.xlu0 %1195
        %v1197 = vadd.f32 %v1086, %v1088
        %1198 = vadd.xlane.f32.xlu0 %v1197
        %v1199 = vpop.xlane.xlu0 %1198
        %v1200 = vadd.f32 %v1090, %v1092
        %1201 = vadd.xlane.f32.xlu0 %v1200
        %v1202 = vpop.xlane.xlu0 %1201
        %v1203 = vadd.f32 %v1094, %v1096
        %1204 = vadd.xlane.f32.xlu0 %v1203
        %v1205 = vpop.xlane.xlu0 %1204
        %v1206 = vadd.f32 %v1098, %v1100
        %1207 = vadd.xlane.f32.xlu0 %v1206
        %v1208 = vpop.xlane.xlu0 %1207
        %v1209 = vadd.f32 %v1102, %v1104
        %1210 = vadd.xlane.f32.xlu0 %v1209
        %v1211 = vpop.xlane.xlu0 %1210
        %v1212 = vadd.f32 %v1106, %v1108
        %1213 = vadd.xlane.f32.xlu0 %v1212
        %v1214 = vpop.xlane.xlu0 %1213
        %v1215 = vadd.f32 %v1110, %v1112
        %1216 = vadd.xlane.f32.xlu0 %v1215
        %v1217 = vpop.xlane.xlu0 %1216
        %v1218 = vadd.f32 %v1114, %v1116
        %1219 = vadd.xlane.f32.xlu0 %v1218
        %v1220 = vpop.xlane.xlu0 %1219
        %v1221 = vadd.f32 %v1118, %v1120
        %1222 = vadd.xlane.f32.xlu0 %v1221
        %v1223 = vpop.xlane.xlu0 %1222
        %v1224 = vadd.f32 %v1122, %v1124
        %1225 = vadd.xlane.f32.xlu0 %v1224
        %v1226 = vpop.xlane.xlu0 %1225
        %v1227 = vadd.f32 %v1126, %v1128
        %1228 = vadd.xlane.f32.xlu0 %v1227
        %v1229 = vpop.xlane.xlu0 %1228
        %v1230 = vadd.f32 %v1130, %v1132
        %1231 = vadd.xlane.f32.xlu0 %v1230
        %v1232 = vpop.xlane.xlu0 %1231
        %v1233 = vadd.f32 %v1134, %v1136
        %1234 = vadd.xlane.f32.xlu0 %v1233
        %v1235 = vpop.xlane.xlu0 %1234
        %v1236 = vadd.f32 %v1138, %v1140
        %1237 = vadd.xlane.f32.xlu0 %v1236
        %v1238 = vpop.xlane.xlu0 %1237
        %v1239 = vadd.f32 %v1142, %v1144
        %1240 = vadd.xlane.f32.xlu0 %v1239
        %v1241 = vpop.xlane.xlu0 %1240
        %v1242 = vadd.f32 %v1146, %v1148
        %1243 = vadd.xlane.f32.xlu0 %v1242
        %v1244 = vpop.xlane.xlu0 %1243
        %v1245 = vrcp.pop %v1151
        %v1246 = vrcp.pop %v1154
        %v1247 = vrcp.pop %v1157
        %v1248 = vrcp.pop %v1160
        %v1249 = vrcp.pop %v1163
        %v1250 = vrcp.pop %v1166
        %v1251 = vrcp.pop %v1169
        %v1252 = vrcp.pop %v1172
        %v1253 = vrcp.pop %v1175
        %v1254 = vrcp.pop %v1178
        %v1255 = vrcp.pop %v1181
        %v1256 = vrcp.pop %v1184
        %v1257 = vrcp.pop %v1187
        %v1258 = vrcp.pop %v1190
        %v1259 = vrcp.pop %v1193
        %v1260 = vrcp.pop %v1196
        %v1261 = vrcp.pop %v1199
        %v1262 = vrcp.pop %v1202
        %v1263 = vrcp.pop %v1205
        %v1264 = vrcp.pop %v1208
        %v1265 = vrcp.pop %v1211
        %v1266 = vrcp.pop %v1214
        %v1267 = vrcp.pop %v1217
        %v1268 = vrcp.pop %v1220
        %v1269 = vrcp.pop %v1223
        %v1270 = vrcp.pop %v1226
        %v1271 = vrcp.pop %v1229
        %v1272 = vrcp.pop %v1232
        %v1273 = vrcp.pop %v1235
        %v1274 = vrcp.pop %v1238
        %v1275 = vrcp.pop %v1241
        %v1276 = vrcp.pop %v1244
        %v1277 = vmul.f32 %v1022, %v1245
        %v1278 = vmul.f32 %v1024, %v1245
        %v1279 = vmul.f32 %v1026, %v1246
        %v1280 = vmul.f32 %v1028, %v1246
        %v1281 = vmul.f32 %v1030, %v1247
        %v1282 = vmul.f32 %v1032, %v1247
        %v1283 = vmul.f32 %v1034, %v1248
        %v1284 = vmul.f32 %v1036, %v1248
        %v1285 = vmul.f32 %v1038, %v1249
        %v1286 = vmul.f32 %v1040, %v1249
        %v1287 = vmul.f32 %v1042, %v1250
        %v1288 = vmul.f32 %v1044, %v1250
        %v1289 = vmul.f32 %v1046, %v1251
        %v1290 = vmul.f32 %v1048, %v1251
        %v1291 = vmul.f32 %v1050, %v1252
        %v1292 = vmul.f32 %v1052, %v1252
        %v1293 = vmul.f32 %v1054, %v1253
        %v1294 = vmul.f32 %v1056, %v1253
        %v1295 = vmul.f32 %v1058, %v1254
        %v1296 = vmul.f32 %v1060, %v1254
        %v1297 = vmul.f32 %v1062, %v1255
        %v1298 = vmul.f32 %v1064, %v1255
        %v1299 = vmul.f32 %v1066, %v1256
        %v1300 = vmul.f32 %v1068, %v1256
        %v1301 = vmul.f32 %v1070, %v1257
        %v1302 = vmul.f32 %v1072, %v1257
        %v1303 = vmul.f32 %v1074, %v1258
        %v1304 = vmul.f32 %v1076, %v1258
        %v1305 = vmul.f32 %v1078, %v1259
        %v1306 = vmul.f32 %v1080, %v1259
        %v1307 = vmul.f32 %v1082, %v1260
        %v1308 = vmul.f32 %v1084, %v1260
        %v1309 = vmul.f32 %v1086, %v1261
        %v1310 = vmul.f32 %v1088, %v1261
        %v1311 = vmul.f32 %v1090, %v1262
        %v1312 = vmul.f32 %v1092, %v1262
        %v1313 = vmul.f32 %v1094, %v1263
        %v1314 = vmul.f32 %v1096, %v1263
        %v1315 = vmul.f32 %v1098, %v1264
        %v1316 = vmul.f32 %v1100, %v1264
        %v1317 = vmul.f32 %v1102, %v1265
        %v1318 = vmul.f32 %v1104, %v1265
        %v1319 = vmul.f32 %v1106, %v1266
        %v1320 = vmul.f32 %v1108, %v1266
        %v1321 = vmul.f32 %v1110, %v1267
        %v1322 = vmul.f32 %v1112, %v1267
        %v1323 = vmul.f32 %v1114, %v1268
        %v1324 = vmul.f32 %v1116, %v1268
        %v1325 = vmul.f32 %v1118, %v1269
        %v1326 = vmul.f32 %v1120, %v1269
        %v1327 = vmul.f32 %v1122, %v1270
        %v1328 = vmul.f32 %v1124, %v1270
        %v1329 = vmul.f32 %v1126, %v1271
        %v1330 = vmul.f32 %v1128, %v1271
        %v1331 = vmul.f32 %v1130, %v1272
        %v1332 = vmul.f32 %v1132, %v1272
        %v1333 = vmul.f32 %v1134, %v1273
        %v1334 = vmul.f32 %v1136, %v1273
        %v1335 = vmul.f32 %v1138, %v1274
        %v1336 = vmul.f32 %v1140, %v1274
        %v1337 = vmul.f32 %v1142, %v1275
        %v1338 = vmul.f32 %v1144, %v1275
        %v1339 = vmul.f32 %v1146, %v1276
        %v1340 = vmul.f32 %v1148, %v1276
        %1341 = vst [vmem:[%s245] sm:$0xff] %v1277
        %1342 = vst [vmem:[%s245 + $0x8] sm:$0xff] %v1278
        %1343 = vst [vmem:[%s245 + $0x10] sm:$0xff] %v1279
        %1344 = vst [vmem:[%s245 + $0x18] sm:$0xff] %v1280
        %1345 = vst [vmem:[%s245 + $0x20] sm:$0xff] %v1281
        %1346 = vst [vmem:[%s245 + $0x28] sm:$0xff] %v1282
        %1347 = vst [vmem:[%s245 + $0x30] sm:$0xff] %v1283
        %1348 = vst [vmem:[%s245 + $0x38] sm:$0xff] %v1284
        %1349 = vst [vmem:[%s245 + $0x40] sm:$0xff] %v1285
        %1350 = vst [vmem:[%s245 + $0x48] sm:$0xff] %v1286
        %1351 = vst [vmem:[%s245 + $0x50] sm:$0xff] %v1287
        %1352 = vst [vmem:[%s245 + $0x58] sm:$0xff] %v1288
        %1353 = vst [vmem:[%s245 + $0x60] sm:$0xff] %v1289
        %1354 = vst [vmem:[%s245 + $0x68] sm:$0xff] %v1290
        %1355 = vst [vmem:[%s245 + $0x70] sm:$0xff] %v1291
        %1356 = vst [vmem:[%s245 + $0x78] sm:$0xff] %v1292
        %1357 = vst [vmem:[%s245 + $0x80] sm:$0xff] %v1293
        %1358 = vst [vmem:[%s245 + $0x88] sm:$0xff] %v1294
        %1359 = vst [vmem:[%s245 + $0x90] sm:$0xff] %v1295
        %1360 = vst [vmem:[%s245 + $0x98] sm:$0xff] %v1296
        %1361 = vst [vmem:[%s245 + $0xa0] sm:$0xff] %v1297
        %1362 = vst [vmem:[%s245 + $0xa8] sm:$0xff] %v1298
        %1363 = vst [vmem:[%s245 + $0xb0] sm:$0xff] %v1299
        %1364 = vst [vmem:[%s245 + $0xb8] sm:$0xff] %v1300
        %1365 = vst [vmem:[%s245 + $0xc0] sm:$0xff] %v1301
        %1366 = vst [vmem:[%s245 + $0xc8] sm:$0xff] %v1302
        %1367 = vst [vmem:[%s245 + $0xd0] sm:$0xff] %v1303
        %1368 = vst [vmem:[%s245 + $0xd8] sm:$0xff] %v1304
        %1369 = vst [vmem:[%s245 + $0xe0] sm:$0xff] %v1305
        %1370 = vst [vmem:[%s245 + $0xe8] sm:$0xff] %v1306
        %1371 = vst [vmem:[%s245 + $0xf0] sm:$0xff] %v1307
        %1372 = vst [vmem:[%s245 + $0xf8] sm:$0xff] %v1308
        %1373 = vst [vmem:[%s245 + $0x100] sm:$0xff] %v1309
        %1374 = vst [vmem:[%s245 + $0x108] sm:$0xff] %v1310
        %1375 = vst [vmem:[%s245 + $0x110] sm:$0xff] %v1311
        %1376 = vst [vmem:[%s245 + $0x118] sm:$0xff] %v1312
        %1377 = vst [vmem:[%s245 + $0x120] sm:$0xff] %v1313
        %1378 = vst [vmem:[%s245 + $0x128] sm:$0xff] %v1314
        %1379 = vst [vmem:[%s245 + $0x130] sm:$0xff] %v1315
        %1380 = vst [vmem:[%s245 + $0x138] sm:$0xff] %v1316
        %1381 = vst [vmem:[%s245 + $0x140] sm:$0xff] %v1317
        %1382 = vst [vmem:[%s245 + $0x148] sm:$0xff] %v1318
        %1383 = vst [vmem:[%s245 + $0x150] sm:$0xff] %v1319
        %1384 = vst [vmem:[%s245 + $0x158] sm:$0xff] %v1320
        %1385 = vst [vmem:[%s245 + $0x160] sm:$0xff] %v1321
        %1386 = vst [vmem:[%s245 + $0x168] sm:$0xff] %v1322
        %1387 = vst [vmem:[%s245 + $0x170] sm:$0xff] %v1323
        %1388 = vst [vmem:[%s245 + $0x178] sm:$0xff] %v1324
        %1389 = vst [vmem:[%s245 + $0x180] sm:$0xff] %v1325
        %1390 = vst [vmem:[%s245 + $0x188] sm:$0xff] %v1326
        %1391 = vst [vmem:[%s245 + $0x190] sm:$0xff] %v1327
        %1392 = vst [vmem:[%s245 + $0x198] sm:$0xff] %v1328
        %1393 = vst [vmem:[%s245 + $0x1a0] sm:$0xff] %v1329
        %1394 = vst [vmem:[%s245 + $0x1a8] sm:$0xff] %v1330
        %1395 = vst [vmem:[%s245 + $0x1b0] sm:$0xff] %v1331
        %1396 = vst [vmem:[%s245 + $0x1b8] sm:$0xff] %v1332
        %1397 = vst [vmem:[%s245 + $0x1c0] sm:$0xff] %v1333
        %1398 = vst [vmem:[%s245 + $0x1c8] sm:$0xff] %v1334
        %1399 = vst [vmem:[%s245 + $0x1d0] sm:$0xff] %v1335
        %1400 = vst [vmem:[%s245 + $0x1d8] sm:$0xff] %v1336
        %1401 = vst [vmem:[%s245 + $0x1e0] sm:$0xff] %v1337
        %1402 = vst [vmem:[%s245 + $0x1e8] sm:$0xff] %v1338
        %1403 = vst [vmem:[%s245 + $0x1f0] sm:$0xff] %v1339
        %1404 = vst [vmem:[%s245 + $0x1f8] sm:$0xff] %v1340
        %v1405 = vrot.slane %v434, 4
        %v1406 = vrot.slane %v435, 4
        %1409 = vmatprep.subr.mxu0 %v1278
        %1410 = vmatpush1.xpose.msra.mxu0 %v1277
        %1411 = vmatprep.subr.mxu0 %v1280
        %1412 = vmatpush1.xpose.msra.mxu0 %v1279
        %1413 = vmatprep.subr.mxu0 %v1282
        %1414 = vmatpush1.xpose.msra.mxu0 %v1281
        %1415 = vmatprep.subr.mxu0 %v1284
        %1416 = vmatpush1.xpose.msra.mxu0 %v1283
        %1417 = vmatprep.subr.mxu0 %v1286
        %1418 = vmatpush1.xpose.msra.mxu0 %v1285
        %1419 = vmatprep.subr.mxu0 %v1288
        %1420 = vmatpush1.xpose.msra.mxu0 %v1287
        %1421 = vmatprep.subr.mxu0 %v1290
        %1422 = vmatpush1.xpose.msra.mxu0 %v1289
        %1423 = vmatprep.subr.mxu0 %v1292
        %1424 = vmatpush1.xpose.msra.mxu0 %v1291
        %1425 = vmatprep.subr.mxu0 %v1294
        %1426 = vmatpush1.xpose.msra.mxu0 %v1293
        %1427 = vmatprep.subr.mxu0 %v1296
        %1428 = vmatpush1.xpose.msra.mxu0 %v1295
        %1429 = vmatprep.subr.mxu0 %v1298
        %1430 = vmatpush1.xpose.msra.mxu0 %v1297
        %1431 = vmatprep.subr.mxu0 %v1300
        %1432 = vmatpush1.xpose.msra.mxu0 %v1299
        %1433 = vmatprep.subr.mxu0 %v1302
        %1434 = vmatpush1.xpose.msra.mxu0 %v1301
        %1435 = vmatprep.subr.mxu0 %v1304
        %1436 = vmatpush1.xpose.msra.mxu0 %v1303
        %1437 = vmatprep.subr.mxu0 %v1306
        %1438 = vmatpush1.xpose.msra.mxu0 %v1305
        %1439 = vmatprep.subr.mxu0 %v1308
        %1440 = vmatpush1.xpose.msra.mxu0 %v1307
        %1441 = vmatprep.subr.mxu0 %v1310
        %1442 = vmatpush1.xpose.msra.mxu0 %v1309
        %1443 = vmatprep.subr.mxu0 %v1312
        %1444 = vmatpush1.xpose.msra.mxu0 %v1311
        %1445 = vmatprep.subr.mxu0 %v1314
        %1446 = vmatpush1.xpose.msra.mxu0 %v1313
        %1447 = vmatprep.subr.mxu0 %v1316
        %1448 = vmatpush1.xpose.msra.mxu0 %v1315
        %1449 = vmatprep.subr.mxu0 %v1318
        %1450 = vmatpush1.xpose.msra.mxu0 %v1317
        %1451 = vmatprep.subr.mxu0 %v1320
        %1452 = vmatpush1.xpose.msra.mxu0 %v1319
        %1453 = vmatprep.subr.mxu0 %v1322
        %1454 = vmatpush1.xpose.msra.mxu0 %v1321
        %1455 = vmatprep.subr.mxu0 %v1324
        %1456 = vmatpush1.xpose.msra.mxu0 %v1323
        %1457 = vmatprep.subr.mxu0 %v1326
        %1458 = vmatpush1.xpose.msra.mxu0 %v1325
        %1459 = vmatprep.subr.mxu0 %v1328
        %1460 = vmatpush1.xpose.msra.mxu0 %v1327
        %1461 = vmatprep.subr.mxu0 %v1330
        %1462 = vmatpush1.xpose.msra.mxu0 %v1329
        %1463 = vmatprep.subr.mxu0 %v1332
        %1464 = vmatpush1.xpose.msra.mxu0 %v1331
        %1465 = vmatprep.subr.mxu0 %v1334
        %1466 = vmatpush1.xpose.msra.mxu0 %v1333
        %1467 = vmatprep.subr.mxu0 %v1336
        %1468 = vmatpush1.xpose.msra.mxu0 %v1335
        %1469 = vmatprep.subr.mxu0 %v1338
        %1470 = vmatpush1.xpose.msra.mxu0 %v1337
        %1471 = vmatprep.subr.mxu0 %v1340
        %1472 = vmatpush1.xpose.msra.mxu0 %v1339
        %1473 = vmatprep.mubr.f32.mxu0 %v1406
        %1474 = vmatmul.mubr.f32.gmra.mrb[0].mxu0 %v1405
        %v1475 = vpop.f32.mrb[0].mxu0
        %v1476 = vadd.f32 0.0, %v1475
        %v1477 = vpop.f32.mrb[0].mxu0
        %v1478 = vadd.f32 0.0, %v1477
        %1479 = vdwg.mxu0
        %s1480 = sld [smem:[#allocation3]]
        %v1481 = vstv %s1480
        %v1482 = vmul.f32 %v1481, %v1476
        %v1483 = vmul.f32 %v1481, %v1478
        %v1484 = vadd.f32 %v1482, %v349
        %v1485 = vadd.f32 %v1483, %v350
        %v1488 = vcombine.low %v1484, %v1485
        %1490 = vst [vmem:[%s238] sm:$0xff] %v1488
        %s1491 = sand.u32 %s135, 1
        %s1492 = scalar_lea.sflag [#allocation5], %s1491
        %s1493 = sand.u32 %s135, 1
        %s1494 = smul.addr %s1493, 8
        %s1495 = scalar_lea.vmem [#allocation4], %s1494
        %s1496 = sand.u32 %s163, 1
        %s1497 = scalar_lea.sflag [#allocation7], %s1496
        %s1498 = sand.u32 %s163, 1
        %s1499 = smul.addr %s1498, 512
        %s1500 = scalar_lea.vmem [#allocation6], %s1499
        // Predicated region
        $region41: #{tpu_custom_call.1} parent=35 // pred_check
          %p1501 = pneg %p145
        $region42: #{tpu_custom_call.1} parent=35 // pred_check_branch
          %1503 = sbr.rel (%p1501) target = $region44
        $region43: #{tpu_custom_call.1} parent=35 // pred_region
          %s1504 = smul.u32 2, %s29
          %s1506 = ssub.s32 128, 128
          %1507 = vsyncadd %s1492, %s1506
          %s1508 = smul.addr %s28, 2
          %s1509 = sadd.s32 %s1504, %s1508
          %s1510 = smul.addr %s1509, 64
          %s1511 = scalar_lea.hbm %s4, %s1510
          %s1513 = sshll.u32 %s1495, 4
          %s1514 = int_to_ptr.vmem [resolvable:$true] %s1513
          %1516 = dma.vmem_to_hbm [thread:$0]  %s1514, 128, %s1511, %s1492
        $region44: #{tpu_custom_call.1} parent=35 // pred_fallthru
          _
        // Predicated region
        $region45: #{tpu_custom_call.1} parent=35 // pred_check
          %p1517 = pneg %p173
        $region46: #{tpu_custom_call.1} parent=35 // pred_check_branch
          %1519 = sbr.rel (%p1517) target = $region48
        $region47: #{tpu_custom_call.1} parent=35 // pred_region
          %s1520 = smul.u32 32, %s29
          %s1522 = ssub.s32 8192, 8192
          %1523 = vsyncadd %s1497, %s1522
          %s1524 = smul.addr %s1520, 2
          %s1525 = smul.addr %s28, 64
          %s1526 = sadd.s32 %s1524, %s1525
          %s1527 = smul.addr %s1526, 128
          %s1528 = scalar_lea.hbm %s5, %s1527
          %s1529 = sshll.u32 %s1500, 4
          %s1530 = int_to_ptr.vmem [resolvable:$true] %s1529
          %1535 = dma.vmem_to_hbm [thread:$0]  %s1530, 8192, %s1528, %s1497, 256, 256, 16
        $region48: #{tpu_custom_call.1} parent=35 // pred_fallthru
          _
      $region36: #{tpu_custom_call.1} parent=5 // pred_fallthru
        _
      %p1536 = scmp.le.s32.totalorder 2, %s19
      // Predicated region
      $region49: #{tpu_custom_call.1} parent=5 // pred_check
        %p1537 = pneg %p1536
      $region50: #{tpu_custom_call.1} parent=5 // pred_check_branch
        %1539 = sbr.rel (%p1537) target = $region52
      $region51: #{tpu_custom_call.1} parent=5 // pred_region
        %s1540 = ssub.s32 %s19, 2
        // Predicated region
        $region53: #{tpu_custom_call.1} parent=51 // pred_check
          %p1541 = pneg %p151
        $region54: #{tpu_custom_call.1} parent=51 // pred_check_branch
          %1543 = sbr.rel (%p1541) target = $region56
        $region55: #{tpu_custom_call.1} parent=51 // pred_region
          %s1544 = sand.u32 %s136, 1
          %s1545 = scalar_lea.sflag [#allocation5], %s1544
          %s1546 = sand.u32 %s136, 1
          %s1547 = smul.addr %s1546, 8
          %s1548 = scalar_lea.vmem [#allocation4], %s1547
          %1549 = dma.done %s1545, 128
        $region56: #{tpu_custom_call.1} parent=51 // pred_fallthru
          _
        // Predicated region
        $region57: #{tpu_custom_call.1} parent=51 // pred_check
          %p1550 = pneg %p179
        $region58: #{tpu_custom_call.1} parent=51 // pred_check_branch
          %1552 = sbr.rel (%p1550) target = $region60
        $region59: #{tpu_custom_call.1} parent=51 // pred_region
          %s1553 = sand.u32 %s164, 1
          %s1554 = scalar_lea.sflag [#allocation7], %s1553
          %s1555 = sand.u32 %s164, 1
          %s1556 = smul.addr %s1555, 512
          %s1557 = scalar_lea.vmem [#allocation6], %s1556
          %1558 = dma.done %s1554, 8192
        $region60: #{tpu_custom_call.1} parent=51 // pred_fallthru
          _
      $region52: #{tpu_custom_call.1} parent=5 // pred_fallthru
        _
    $region6: #{tpu_custom_call.1} parent=1 // loop_footer
      %s23 = sadd.s32 1, %s19
    $region7: #{tpu_custom_call.1} parent=1 // loop_footer_branch
      %18 = sbr.rel target = $region3
    $region8: #{tpu_custom_call.1} parent=1 // loop_exit
      _
    %1559 = vsyncpa [#allocation5], 1
    %s1560 = scalar_lea.sflag [#allocation5], 1
    %1561 = vsyncpa %s1560, 1
    %1562 = vsyncpa [#allocation7], 1
    %s1563 = scalar_lea.sflag [#allocation7], 1
    %1564 = vsyncpa %s1563, 1

</llo_original>
